<compile_context>
chip_gen: v5e
topology: v5e:2x2
jax: 0.10.0
libtpu: 0.0.40
codegen_flags: <defaults>
</compile_context>

<pallas_src>
import math
import functools

import jax
import jax.numpy as jnp
from jax import lax
from jax.experimental import pallas as pl
from jax.experimental.pallas import tpu as pltpu


def _round_up(x, m):
    return ((x + m - 1) // m) * m


def _num_tensorcores():
    """Best-effort TensorCores per device (v7x: 2, v5e/v6e: 1)."""
    try:
        kind = jax.devices()[0].device_kind.lower()
        if "v7" in kind:
            return 2
    except Exception:
        pass
    return 1


def _vmem_limit_bytes():
    """Per-core VMEM budget with headroom for compiler-internal scratch."""
    cap = 128 * 1024 * 1024
    try:
        info = pltpu.get_tpu_info()
        cap = int(getattr(info, "vmem_capacity_bytes", cap))
    except Exception:
        pass
    try:
        if "v7" in jax.devices()[0].device_kind.lower():
            cap = min(cap, 64 * 1024 * 1024)   # v7x: 64 MiB physical per TC
    except Exception:
        pass
    return int(cap * 0.8)


def _choose_tc(tc, bb, hp, t_len, vmem_limit):
    """Largest time block <= tc whose (double-buffered) tiles fit VMEM."""
    tc = max(1, min(tc, t_len))   # also avoids padded-timestep wasted work

    def budget(tc_):
        gi = 2 * tc_ * bb * 3 * hp * 2      # bf16 gi block, double-buffered
        y = 2 * tc_ * bb * hp * 2           # bf16 y block, double-buffered
        wh = 2 * hp * 3 * hp * 2            # bf16 hidden weights (2 bufs, pessimistic)
        h = bb * hp * 4                     # f32 hidden-state scratch
        return gi + y + wh + h + (1 << 20)  # + 1 MiB slack

    while tc > 1 and budget(tc) > int(vmem_limit * 0.85):
        tc = max(1, tc // 2)
    return tc


# ----------------------------------------------------------------------------
# Pallas kernel: sequential GRU recurrence over a block of Tc timesteps.
# ----------------------------------------------------------------------------
def _gru_recurrence_kernel(gi_ref, wh_ref, bhn_ref, y_ref, h_ref):
    """Grid = (batch_blocks [parallel], time_blocks [arbitrary]).

      gi_ref : (Tc, Bb, 3*Hp) bf16  x@W_i + b_i (+ b_hr/b_hz folded for t>=1);
                                    at t == 0 the r-block is -1e9 (forces r=0)
                                    and the z-block has no hidden bias.
      wh_ref : (Hp, 3*Hp)     bf16  hidden weights, gates [r|z|n]
      bhn_ref: (1, Hp)        f32   hidden bias of the n gate
      y_ref  : (Tc, Bb, Hp)   bf16  per-timestep hidden outputs
      h_ref  : (Bb, Hp)       f32   VMEM scratch carrying h across time blocks
    """
    tb = pl.program_id(1)
    tc = gi_ref.shape[0]
    bb, hp = h_ref.shape

    @pl.when(tb == 0)
    def _():
        h_ref[...] = jnp.zeros_like(h_ref)

    # Hoisted once per grid step (not re-broadcast every unrolled step).
    bhn = jnp.broadcast_to(bhn_ref[...], (bb, hp))

    def step(i, h):
        # Recurrent matmul: bf16 operands, f32 accumulation on the MXU.
        gh = jnp.dot(h.astype(jnp.bfloat16), wh_ref[...],
                     preferred_element_type=jnp.float32)       # (Bb, 3Hp) f32
        # Slice gates directly from the ref (128-lane aligned, no relayout),
        # keeping live ranges to one gate at a time.
        r = jax.nn.sigmoid(gi_ref[i, :, 0:hp] + gh[:, 0:hp])
        z = jax.nn.sigmoid(gi_ref[i, :, hp:2 * hp] + gh[:, hp:2 * hp])
        n = jnp.tanh(gi_ref[i, :, 2 * hp:3 * hp]
                     + r * (gh[:, 2 * hp:3 * hp] + bhn))
        h_new = n + z * (h - n)             # == (1-z)*n + z*h, one fewer VPU op
        y_ref[i] = h_new.astype(y_ref.dtype)
        return h_new

    h_ref[...] = lax.fori_loop(0, tc, step, h_ref[...], unroll=True)


def _gru_recurrence(gi, wh_bf16, bhn, *, tc, bb, vmem_limit):
    """Run the recurrence for one layer.  gi: (T_pad, Bp, 3*Hp) bf16."""
    t_pad, bp, g3 = gi.shape
    hp = g3 // 3
    grid = (bp // bb, t_pad // tc)

    return pl.pallas_call(
        _gru_recurrence_kernel,
        out_shape=jax.ShapeDtypeStruct((t_pad, bp, hp), jnp.bfloat16),
        grid_spec=pltpu.PrefetchScalarGridSpec(
            num_scalar_prefetch=0,
            grid=grid,
            in_specs=[
                pl.BlockSpec((tc, bb, 3 * hp), lambda b, t: (t, b, 0)),
                pl.BlockSpec((hp, 3 * hp), lambda b, t: (0, 0)),
                pl.BlockSpec((1, hp), lambda b, t: (0, 0)),
            ],
            out_specs=pl.BlockSpec((tc, bb, hp), lambda b, t: (t, b, 0)),
            scratch_shapes=[pltpu.VMEM((bb, hp), jnp.float32)],
        ),
        compiler_params=pltpu.CompilerParams(
            dimension_semantics=("parallel", "arbitrary"),
            vmem_limit_bytes=vmem_limit,
        ),
    )(gi, wh_bf16, bhn)


# ----------------------------------------------------------------------------
# Parameter construction / packing
# ----------------------------------------------------------------------------
def init_gru_params(key, input_size, hidden_size, num_layers):
    """Deterministic uniform(-k, k) init, k = sqrt(1/hidden_size).
    Per layer: wi (in_dim, 3H), wh (H, 3H), bi (1, 3H), bh (1, 3H);
    gate order is [r | z | n] along the last axis."""
    k = math.sqrt(1.0 / hidden_size)
    params = []
    for layer in range(num_layers):
        in_dim = input_size if layer == 0 else hidden_size
        key, *subs = jax.random.split(key, 5)
        wi = jax.random.uniform(subs[0], (in_dim, 3 * hidden_size),
                                minval=-k, maxval=k, dtype=jnp.float32)
        wh = jax.random.uniform(subs[1], (hidden_size, 3 * hidden_size),
                                minval=-k, maxval=k, dtype=jnp.float32)
        bi = jax.random.uniform(subs[2], (1, 3 * hidden_size),
                                minval=-k, maxval=k, dtype=jnp.float32)
        bh = jax.random.uniform(subs[3], (1, 3 * hidden_size),
                                minval=-k, maxval=k, dtype=jnp.float32)
        params.append((wi, wh, bi, bh))
    return params


def prepare_params(raw_params, hidden_size, hp):
    """Pad each gate block from H -> Hp (lane alignment), cast weights to bf16,
    fold b_hr/b_hz into the generic-step bias, and build the t==0 correction."""
    h = hidden_size
    packed = []
    for layer, (wi, wh, bi, bh) in enumerate(raw_params):
        in_rows = wi.shape[0]
        in_rows_p = in_rows if layer == 0 else hp
        wi_p = jnp.zeros((in_rows_p, 3 * hp), jnp.float32)
        wh_p = jnp.zeros((hp, 3 * hp), jnp.float32)
        bi_p = jnp.zeros((1, 3 * hp), jnp.float32)
        bh_p = jnp.zeros((1, 3 * hp), jnp.float32)
        for g in range(3):
            wi_p = wi_p.at[:in_rows, g * hp:g * hp + h].set(wi[:, g * h:(g + 1) * h])
            wh_p = wh_p.at[:h, g * hp:g * hp + h].set(wh[:, g * h:(g + 1) * h])
            bi_p = bi_p.at[:, g * hp:g * hp + h].set(bi[:, g * h:(g + 1) * h])
            bh_p = bh_p.at[:, g * hp:g * hp + h].set(bh[:, g * h:(g + 1) * h])
        # Generic-step (t>=1) bias folded into gi: b_i + [b_hr | b_hz | 0].
        # b_hn cannot be folded (it sits inside r * (h@W_hn + b_hn)).
        bh_rz = bh_p.at[:, 2 * hp:].set(0.0)
        b_gen = bi_p + bh_rz
        # t == 0 correction added to gi[0]:
        #   r block -> -1e9 (r becomes 0; r is unused at t==0 and this kills
        #              the r*b_hn term so no per-step masking is needed),
        #   z block -> remove the folded b_hz,
        #   n block -> nothing (b_hn was never folded).
        b_first_delta = jnp.zeros((1, 3 * hp), jnp.float32)
        b_first_delta = b_first_delta.at[:, :hp].set(-1e9)
        b_first_delta = b_first_delta.at[:, hp:2 * hp].set(-bh_p[:, hp:2 * hp])
        bhn = bh_p[:, 2 * hp:3 * hp]                     # (1, Hp)
        packed.append((wi_p.astype(jnp.bfloat16), wh_p.astype(jnp.bfloat16),
                       b_gen, b_first_delta, bhn))
    return tuple(packed)


# ----------------------------------------------------------------------------
# Forward pass
# ----------------------------------------------------------------------------
@functools.partial(jax.jit,
                   static_argnames=("hidden_size", "tc", "bb", "vmem_limit"))
def _gru_forward_impl(x, packed_params, *, hidden_size, tc, bb, vmem_limit):
    t_len, b, _ = x.shape
    hp = packed_params[0][1].shape[0]          # padded hidden size
    bp = _round_up(max(b, 8), bb)
    t_pad = _round_up(t_len, tc)

    inp = jnp.pad(x, ((0, t_pad - t_len), (0, bp - b), (0, 0))).astype(jnp.bfloat16)
    hns = []
    for (wi_bf, wh_bf, b_gen, b_first_delta, bhn) in packed_params:
        # Hoisted input projection for all timesteps: one big bf16 MXU matmul
        # off the serial critical path; r/z hidden biases folded in for t>=1.
        gi = jnp.einsum("tbi,ig->tbg", inp, wi_bf,
                        preferred_element_type=jnp.float32) + b_gen
        gi = gi.at[0].add(b_first_delta)        # hx=None semantics at t == 0
        gi = gi.astype(jnp.bfloat16)            # halve the dominant HBM stream
        y = _gru_recurrence(gi, wh_bf, bhn, tc=tc, bb=bb, vmem_limit=vmem_limit)
        hns.append(y[t_len - 1, :b, :hidden_size].astype(jnp.float32))
        inp = y
        # TODO(synk): fusing the per-block input projection (and all layers)
        # into the pallas_call would also remove the gi HBM round-trip; kept
        # in XLA so each layer's projection stays a single large matmul.
    out = inp[:t_len, :b, :hidden_size].astype(jnp.float32)
    return out, jnp.stack(hns)


def gru_forward(x, packed_params, *, hidden_size, tc=32):
    """x: (T, B, input_size) f32.  Returns (y: (T,B,H) f32, hns: (L,B,H) f32)."""
    t_len, b, _ = x.shape
    hp = packed_params[0][1].shape[0]
    n_tc = _num_tensorcores()
    vmem_limit = _vmem_limit_bytes()
    if n_tc >= 2 and b >= 16:
        # v7x: >= 2 batch blocks so the "parallel" axis uses both TensorCores.
        bb = _round_up(-(-b // n_tc), 8)
    else:
        # Single-TC chips: one batch block (extra blocks = pure serial replay).
        bb = _round_up(max(b, 8), 8)
    tc_eff = _choose_tc(tc, bb, hp, t_len, vmem_limit)
    return _gru_forward_impl(x, packed_params, hidden_size=hidden_size,
                             tc=tc_eff, bb=bb, vmem_limit=vmem_limit)


# ----------------------------------------------------------------------------
# Pure-JAX reference mirroring the PyTorch module (hx starts as None)
# ----------------------------------------------------------------------------
def gru_reference(x, raw_params):
    h_dim = raw_params[0][1].shape[0]
    inputs = x
    hns = []
    for (wi, wh, bi, bh) in raw_params:
        t_len = inputs.shape[0]
        outs = []
        h = None
        for t in range(t_len):
            xt = inputs[t]
            gi = xt @ wi + bi
            xr, xz, xn = gi[:, :h_dim], gi[:, h_dim:2 * h_dim], gi[:, 2 * h_dim:]
            if h is None:
                z = jax.nn.sigmoid(xz)
                n = jnp.tanh(xn)
                h = (1.0 - z) * n
            else:
                gh = h @ wh + bh
                hr, hz, hn = gh[:, :h_dim], gh[:, h_dim:2 * h_dim], gh[:, 2 * h_dim:]
                r = jax.nn.sigmoid(xr + hr)
                z = jax.nn.sigmoid(xz + hz)
                n = jnp.tanh(xn + r * hn)
                h = (1.0 - z) * n + z * h
            outs.append(h)
        inputs = jnp.stack(outs)
        hns.append(h)
    return inputs, jnp.stack(hns)


if __name__ == "__main__":
    T, B = 8, 4
    input_size, hidden_size, num_layers = 16, 32, 2

    key = jax.random.PRNGKey(0)
    key, xkey = jax.random.split(key)
    x = jax.random.normal(xkey, (T, B, input_size), dtype=jnp.float32)

    raw_params = init_gru_params(key, input_size, hidden_size, num_layers)
    Hp = _round_up(hidden_size, 128)
    packed = prepare_params(raw_params, hidden_size, Hp)

    y, hns = gru_forward(x, packed, hidden_size=hidden_size, tc=32)
    y, hns = jax.block_until_ready((y, hns))

    # Sanity check against the pure-JAX f32 reference (bf16 gi / activations /
    # recurrent matmul => loose tolerance).
    y_ref, hns_ref = gru_reference(x, raw_params)
    assert y.shape == (T, B, hidden_size)
    assert hns.shape == (num_layers, B, hidden_size)
    assert jnp.allclose(y, y_ref, atol=2e-2, rtol=2e-2)
    assert jnp.allclose(hns, hns_ref, atol=2e-2, rtol=2e-2)

    print("KERNEL_OK")
</pallas_src>

<mosaic_0001>
module attributes {stable_mosaic.version = 11 : i64} {
  func.func @_gru_recurrence_kernel(%arg0: i32, %arg1: i32, %arg2: memref<8x8x384xbf16, #tpu.memory_space<vmem>>, %arg3: memref<128x384xbf16, #tpu.memory_space<vmem>>, %arg4: memref<1x128xf32, #tpu.memory_space<vmem>>, %arg5: memref<8x8x128xbf16, #tpu.memory_space<vmem>>, %arg6: memref<8x128xf32, #tpu.memory_space<vmem>>) attributes {dimension_semantics = [#tpu.dimension_semantics<parallel>, #tpu.dimension_semantics<arbitrary>], iteration_bounds = array<i64: 1, 1>, scalar_prefetch = 0 : i64, scratch_operands = 1 : i64, tpu.core_type = #tpu.core_type<tc>, window_params = [{transform_indices = @transform_0, window_bounds = array<i64: 8, 8, 384>}, {pipeline_mode = #tpu.pipeline_mode<synchronous>, transform_indices = @transform_1, window_bounds = array<i64: 128, 384>}, {pipeline_mode = #tpu.pipeline_mode<synchronous>, transform_indices = @transform_2, window_bounds = array<i64: 1, 128>}, {transform_indices = @transform_3, window_bounds = array<i64: 8, 8, 128>}]} {
    %c0_i32 = arith.constant 0 : i32
    %0 = arith.cmpi eq, %arg1, %c0_i32 : i32
    %1 = arith.extui %0 : i1 to i32
    %c0_i32_0 = arith.constant 0 : i32
    %2 = arith.cmpi ne, %1, %c0_i32_0 : i32
    scf.if %2 {
      %cst_108 = arith.constant 0.000000e+00 : f32
      %344 = vector.broadcast %cst_108 : f32 to vector<8x128xf32>
      %c0_109 = arith.constant 0 : index
      %c0_110 = arith.constant 0 : index
      %345 = vector.load %arg6[%c0_109, %c0_110] : memref<8x128xf32, #tpu.memory_space<vmem>>, vector<8x128xf32>
      tpu.vector_store %arg6[%c0_109, %c0_110], %344 {strides = array<i32>} : memref<8x128xf32, #tpu.memory_space<vmem>>, vector<8x128xf32>,
    } else {
    }
    %c0 = arith.constant 0 : index
    %c0_1 = arith.constant 0 : index
    %3 = vector.load %arg4[%c0, %c0_1] : memref<1x128xf32, #tpu.memory_space<vmem>>, vector<1x128xf32>
    %4 = vector.shape_cast %3 : vector<1x128xf32> to vector<1x128xf32>
    %5 = vector.broadcast %4 : vector<1x128xf32> to vector<8x128xf32>
    %c0_2 = arith.constant 0 : index
    %c0_3 = arith.constant 0 : index
    %6 = vector.load %arg6[%c0_2, %c0_3] : memref<8x128xf32, #tpu.memory_space<vmem>>, vector<8x128xf32>
    %c0_i32_4 = arith.constant 0 : i32
    %7 = arith.truncf %6 : vector<8x128xf32> to vector<8x128xbf16>
    %c0_5 = arith.constant 0 : index
    %c0_6 = arith.constant 0 : index
    %8 = vector.load %arg3[%c0_5, %c0_6] : memref<128x384xbf16, #tpu.memory_space<vmem>>, vector<128x384xbf16>
    %cst = arith.constant dense<0.000000e+00> : vector<8x384xf32>
    %9 = tpu.matmul %7, %8, %cst {dimension_numbers = #tpu.dot_dimension_numbers<[1], [0], [0], [1], [0, 0, 1, 1], [], []>} : vector<8x128xbf16>, vector<128x384xbf16>, vector<8x384xf32> -> vector<8x384xf32>
    %10 = arith.index_cast %c0_i32_4 : i32 to index
    %c0_7 = arith.constant 0 : index
    %c0_8 = arith.constant 0 : index
    %11 = vector.load %arg2[%10, %c0_7, %c0_8] : memref<8x8x384xbf16, #tpu.memory_space<vmem>>, vector<1x8x128xbf16>
    %12 = vector.shape_cast %11 : vector<1x8x128xbf16> to vector<8x128xbf16>
    %13 = vector.extract_strided_slice %9 {offsets = [0, 0], sizes = [8, 128], strides = [1, 1]} : vector<8x384xf32> to vector<8x128xf32>
    %14 = arith.extf %12 : vector<8x128xbf16> to vector<8x128xf32>
    %15 = arith.addf %14, %13 : vector<8x128xf32>
    %16 = arith.negf %15 : vector<8x128xf32>
    %17 = math.exp %16 : vector<8x128xf32>
    %cst_9 = arith.constant 1.000000e+00 : f32
    %18 = vector.broadcast %cst_9 : f32 to vector<8x128xf32>
    %19 = arith.addf %18, %17 : vector<8x128xf32>
    %20 = arith.divf %18, %19 : vector<8x128xf32>
    %21 = arith.index_cast %c0_i32_4 : i32 to index
    %c0_10 = arith.constant 0 : index
    %c128 = arith.constant 128 : index
    %22 = vector.load %arg2[%21, %c0_10, %c128] : memref<8x8x384xbf16, #tpu.memory_space<vmem>>, vector<1x8x128xbf16>
    %23 = vector.shape_cast %22 : vector<1x8x128xbf16> to vector<8x128xbf16>
    %24 = vector.extract_strided_slice %9 {offsets = [0, 128], sizes = [8, 128], strides = [1, 1]} : vector<8x384xf32> to vector<8x128xf32>
    %25 = arith.extf %23 : vector<8x128xbf16> to vector<8x128xf32>
    %26 = arith.addf %25, %24 : vector<8x128xf32>
    %27 = arith.negf %26 : vector<8x128xf32>
    %28 = math.exp %27 : vector<8x128xf32>
    %cst_11 = arith.constant 1.000000e+00 : f32
    %29 = vector.broadcast %cst_11 : f32 to vector<8x128xf32>
    %30 = arith.addf %29, %28 : vector<8x128xf32>
    %31 = arith.divf %29, %30 : vector<8x128xf32>
    %32 = arith.index_cast %c0_i32_4 : i32 to index
    %c0_12 = arith.constant 0 : index
    %c256 = arith.constant 256 : index
    %33 = vector.load %arg2[%32, %c0_12, %c256] : memref<8x8x384xbf16, #tpu.memory_space<vmem>>, vector<1x8x128xbf16>
    %34 = vector.shape_cast %33 : vector<1x8x128xbf16> to vector<8x128xbf16>
    %35 = vector.extract_strided_slice %9 {offsets = [0, 256], sizes = [8, 128], strides = [1, 1]} : vector<8x384xf32> to vector<8x128xf32>
    %36 = arith.addf %35, %5 : vector<8x128xf32>
    %37 = arith.mulf %20, %36 : vector<8x128xf32>
    %38 = arith.extf %34 : vector<8x128xbf16> to vector<8x128xf32>
    %39 = arith.addf %38, %37 : vector<8x128xf32>
    %40 = math.tanh %39 : vector<8x128xf32>
    %41 = arith.subf %6, %40 : vector<8x128xf32>
    %42 = arith.mulf %31, %41 : vector<8x128xf32>
    %43 = arith.addf %40, %42 : vector<8x128xf32>
    %44 = arith.truncf %43 : vector<8x128xf32> to vector<8x128xbf16>
    %45 = arith.index_cast %c0_i32_4 : i32 to index
    %c0_13 = arith.constant 0 : index
    %c0_14 = arith.constant 0 : index
    %46 = vector.load %arg5[%45, %c0_13, %c0_14] : memref<8x8x128xbf16, #tpu.memory_space<vmem>>, vector<1x8x128xbf16>
    %47 = vector.shape_cast %46 : vector<1x8x128xbf16> to vector<8x128xbf16>
    %48 = vector.shape_cast %44 : vector<8x128xbf16> to vector<1x8x128xbf16>
    tpu.vector_store %arg5[%45, %c0_13, %c0_14], %48 {strides = array<i32>} : memref<8x8x128xbf16, #tpu.memory_space<vmem>>, vector<1x8x128xbf16>,
    %c1_i32 = arith.constant 1 : i32
    %49 = arith.truncf %43 : vector<8x128xf32> to vector<8x128xbf16>
    %c0_15 = arith.constant 0 : index
    %c0_16 = arith.constant 0 : index
    %50 = vector.load %arg3[%c0_15, %c0_16] : memref<128x384xbf16, #tpu.memory_space<vmem>>, vector<128x384xbf16>
    %cst_17 = arith.constant dense<0.000000e+00> : vector<8x384xf32>
    %51 = tpu.matmul %49, %50, %cst_17 {dimension_numbers = #tpu.dot_dimension_numbers<[1], [0], [0], [1], [0, 0, 1, 1], [], []>} : vector<8x128xbf16>, vector<128x384xbf16>, vector<8x384xf32> -> vector<8x384xf32>
    %52 = arith.index_cast %c1_i32 : i32 to index
    %c0_18 = arith.constant 0 : index
    %c0_19 = arith.constant 0 : index
    %53 = vector.load %arg2[%52, %c0_18, %c0_19] : memref<8x8x384xbf16, #tpu.memory_space<vmem>>, vector<1x8x128xbf16>
    %54 = vector.shape_cast %53 : vector<1x8x128xbf16> to vector<8x128xbf16>
    %55 = vector.extract_strided_slice %51 {offsets = [0, 0], sizes = [8, 128], strides = [1, 1]} : vector<8x384xf32> to vector<8x128xf32>
    %56 = arith.extf %54 : vector<8x128xbf16> to vector<8x128xf32>
    %57 = arith.addf %56, %55 : vector<8x128xf32>
    %58 = arith.negf %57 : vector<8x128xf32>
    %59 = math.exp %58 : vector<8x128xf32>
    %cst_20 = arith.constant 1.000000e+00 : f32
    %60 = vector.broadcast %cst_20 : f32 to vector<8x128xf32>
    %61 = arith.addf %60, %59 : vector<8x128xf32>
    %62 = arith.divf %60, %61 : vector<8x128xf32>
    %63 = arith.index_cast %c1_i32 : i32 to index
    %c0_21 = arith.constant 0 : index
    %c128_22 = arith.constant 128 : index
    %64 = vector.load %arg2[%63, %c0_21, %c128_22] : memref<8x8x384xbf16, #tpu.memory_space<vmem>>, vector<1x8x128xbf16>
    %65 = vector.shape_cast %64 : vector<1x8x128xbf16> to vector<8x128xbf16>
    %66 = vector.extract_strided_slice %51 {offsets = [0, 128], sizes = [8, 128], strides = [1, 1]} : vector<8x384xf32> to vector<8x128xf32>
    %67 = arith.extf %65 : vector<8x128xbf16> to vector<8x128xf32>
    %68 = arith.addf %67, %66 : vector<8x128xf32>
    %69 = arith.negf %68 : vector<8x128xf32>
    %70 = math.exp %69 : vector<8x128xf32>
    %cst_23 = arith.constant 1.000000e+00 : f32
    %71 = vector.broadcast %cst_23 : f32 to vector<8x128xf32>
    %72 = arith.addf %71, %70 : vector<8x128xf32>
    %73 = arith.divf %71, %72 : vector<8x128xf32>
    %74 = arith.index_cast %c1_i32 : i32 to index
    %c0_24 = arith.constant 0 : index
    %c256_25 = arith.constant 256 : index
    %75 = vector.load %arg2[%74, %c0_24, %c256_25] : memref<8x8x384xbf16, #tpu.memory_space<vmem>>, vector<1x8x128xbf16>
    %76 = vector.shape_cast %75 : vector<1x8x128xbf16> to vector<8x128xbf16>
    %77 = vector.extract_strided_slice %51 {offsets = [0, 256], sizes = [8, 128], strides = [1, 1]} : vector<8x384xf32> to vector<8x128xf32>
    %78 = arith.addf %77, %5 : vector<8x128xf32>
    %79 = arith.mulf %62, %78 : vector<8x128xf32>
    %80 = arith.extf %76 : vector<8x128xbf16> to vector<8x128xf32>
    %81 = arith.addf %80, %79 : vector<8x128xf32>
    %82 = math.tanh %81 : vector<8x128xf32>
    %83 = arith.subf %43, %82 : vector<8x128xf32>
    %84 = arith.mulf %73, %83 : vector<8x128xf32>
    %85 = arith.addf %82, %84 : vector<8x128xf32>
    %86 = arith.truncf %85 : vector<8x128xf32> to vector<8x128xbf16>
    %87 = arith.index_cast %c1_i32 : i32 to index
    %c0_26 = arith.constant 0 : index
    %c0_27 = arith.constant 0 : index
    %88 = vector.load %arg5[%87, %c0_26, %c0_27] : memref<8x8x128xbf16, #tpu.memory_space<vmem>>, vector<1x8x128xbf16>
    %89 = vector.shape_cast %88 : vector<1x8x128xbf16> to vector<8x128xbf16>
    %90 = vector.shape_cast %86 : vector<8x128xbf16> to vector<1x8x128xbf16>
    tpu.vector_store %arg5[%87, %c0_26, %c0_27], %90 {strides = array<i32>} : memref<8x8x128xbf16, #tpu.memory_space<vmem>>, vector<1x8x128xbf16>,
    %c2_i32 = arith.constant 2 : i32
    %91 = arith.truncf %85 : vector<8x128xf32> to vector<8x128xbf16>
    %c0_28 = arith.constant 0 : index
    %c0_29 = arith.constant 0 : index
    %92 = vector.load %arg3[%c0_28, %c0_29] : memref<128x384xbf16, #tpu.memory_space<vmem>>, vector<128x384xbf16>
    %cst_30 = arith.constant dense<0.000000e+00> : vector<8x384xf32>
    %93 = tpu.matmul %91, %92, %cst_30 {dimension_numbers = #tpu.dot_dimension_numbers<[1], [0], [0], [1], [0, 0, 1, 1], [], []>} : vector<8x128xbf16>, vector<128x384xbf16>, vector<8x384xf32> -> vector<8x384xf32>
    %94 = arith.index_cast %c2_i32 : i32 to index
    %c0_31 = arith.constant 0 : index
    %c0_32 = arith.constant 0 : index
    %95 = vector.load %arg2[%94, %c0_31, %c0_32] : memref<8x8x384xbf16, #tpu.memory_space<vmem>>, vector<1x8x128xbf16>
    %96 = vector.shape_cast %95 : vector<1x8x128xbf16> to vector<8x128xbf16>
    %97 = vector.extract_strided_slice %93 {offsets = [0, 0], sizes = [8, 128], strides = [1, 1]} : vector<8x384xf32> to vector<8x128xf32>
    %98 = arith.extf %96 : vector<8x128xbf16> to vector<8x128xf32>
    %99 = arith.addf %98, %97 : vector<8x128xf32>
    %100 = arith.negf %99 : vector<8x128xf32>
    %101 = math.exp %100 : vector<8x128xf32>
    %cst_33 = arith.constant 1.000000e+00 : f32
    %102 = vector.broadcast %cst_33 : f32 to vector<8x128xf32>
    %103 = arith.addf %102, %101 : vector<8x128xf32>
    %104 = arith.divf %102, %103 : vector<8x128xf32>
    %105 = arith.index_cast %c2_i32 : i32 to index
    %c0_34 = arith.constant 0 : index
    %c128_35 = arith.constant 128 : index
    %106 = vector.load %arg2[%105, %c0_34, %c128_35] : memref<8x8x384xbf16, #tpu.memory_space<vmem>>, vector<1x8x128xbf16>
    %107 = vector.shape_cast %106 : vector<1x8x128xbf16> to vector<8x128xbf16>
    %108 = vector.extract_strided_slice %93 {offsets = [0, 128], sizes = [8, 128], strides = [1, 1]} : vector<8x384xf32> to vector<8x128xf32>
    %109 = arith.extf %107 : vector<8x128xbf16> to vector<8x128xf32>
    %110 = arith.addf %109, %108 : vector<8x128xf32>
    %111 = arith.negf %110 : vector<8x128xf32>
    %112 = math.exp %111 : vector<8x128xf32>
    %cst_36 = arith.constant 1.000000e+00 : f32
    %113 = vector.broadcast %cst_36 : f32 to vector<8x128xf32>
    %114 = arith.addf %113, %112 : vector<8x128xf32>
    %115 = arith.divf %113, %114 : vector<8x128xf32>
    %116 = arith.index_cast %c2_i32 : i32 to index
    %c0_37 = arith.constant 0 : index
    %c256_38 = arith.constant 256 : index
    %117 = vector.load %arg2[%116, %c0_37, %c256_38] : memref<8x8x384xbf16, #tpu.memory_space<vmem>>, vector<1x8x128xbf16>
    %118 = vector.shape_cast %117 : vector<1x8x128xbf16> to vector<8x128xbf16>
    %119 = vector.extract_strided_slice %93 {offsets = [0, 256], sizes = [8, 128], strides = [1, 1]} : vector<8x384xf32> to vector<8x128xf32>
    %120 = arith.addf %119, %5 : vector<8x128xf32>
    %121 = arith.mulf %104, %120 : vector<8x128xf32>
    %122 = arith.extf %118 : vector<8x128xbf16> to vector<8x128xf32>
    %123 = arith.addf %122, %121 : vector<8x128xf32>
    %124 = math.tanh %123 : vector<8x128xf32>
    %125 = arith.subf %85, %124 : vector<8x128xf32>
    %126 = arith.mulf %115, %125 : vector<8x128xf32>
    %127 = arith.addf %124, %126 : vector<8x128xf32>
    %128 = arith.truncf %127 : vector<8x128xf32> to vector<8x128xbf16>
    %129 = arith.index_cast %c2_i32 : i32 to index
    %c0_39 = arith.constant 0 : index
    %c0_40 = arith.constant 0 : index
    %130 = vector.load %arg5[%129, %c0_39, %c0_40] : memref<8x8x128xbf16, #tpu.memory_space<vmem>>, vector<1x8x128xbf16>
    %131 = vector.shape_cast %130 : vector<1x8x128xbf16> to vector<8x128xbf16>
    %132 = vector.shape_cast %128 : vector<8x128xbf16> to vector<1x8x128xbf16>
    tpu.vector_store %arg5[%129, %c0_39, %c0_40], %132 {strides = array<i32>} : memref<8x8x128xbf16, #tpu.memory_space<vmem>>, vector<1x8x128xbf16>,
    %c3_i32 = arith.constant 3 : i32
    %133 = arith.truncf %127 : vector<8x128xf32> to vector<8x128xbf16>
    %c0_41 = arith.constant 0 : index
    %c0_42 = arith.constant 0 : index
    %134 = vector.load %arg3[%c0_41, %c0_42] : memref<128x384xbf16, #tpu.memory_space<vmem>>, vector<128x384xbf16>
    %cst_43 = arith.constant dense<0.000000e+00> : vector<8x384xf32>
    %135 = tpu.matmul %133, %134, %cst_43 {dimension_numbers = #tpu.dot_dimension_numbers<[1], [0], [0], [1], [0, 0, 1, 1], [], []>} : vector<8x128xbf16>, vector<128x384xbf16>, vector<8x384xf32> -> vector<8x384xf32>
    %136 = arith.index_cast %c3_i32 : i32 to index
    %c0_44 = arith.constant 0 : index
    %c0_45 = arith.constant 0 : index
    %137 = vector.load %arg2[%136, %c0_44, %c0_45] : memref<8x8x384xbf16, #tpu.memory_space<vmem>>, vector<1x8x128xbf16>
    %138 = vector.shape_cast %137 : vector<1x8x128xbf16> to vector<8x128xbf16>
    %139 = vector.extract_strided_slice %135 {offsets = [0, 0], sizes = [8, 128], strides = [1, 1]} : vector<8x384xf32> to vector<8x128xf32>
    %140 = arith.extf %138 : vector<8x128xbf16> to vector<8x128xf32>
    %141 = arith.addf %140, %139 : vector<8x128xf32>
    %142 = arith.negf %141 : vector<8x128xf32>
    %143 = math.exp %142 : vector<8x128xf32>
    %cst_46 = arith.constant 1.000000e+00 : f32
    %144 = vector.broadcast %cst_46 : f32 to vector<8x128xf32>
    %145 = arith.addf %144, %143 : vector<8x128xf32>
    %146 = arith.divf %144, %145 : vector<8x128xf32>
    %147 = arith.index_cast %c3_i32 : i32 to index
    %c0_47 = arith.constant 0 : index
    %c128_48 = arith.constant 128 : index
    %148 = vector.load %arg2[%147, %c0_47, %c128_48] : memref<8x8x384xbf16, #tpu.memory_space<vmem>>, vector<1x8x128xbf16>
    %149 = vector.shape_cast %148 : vector<1x8x128xbf16> to vector<8x128xbf16>
    %150 = vector.extract_strided_slice %135 {offsets = [0, 128], sizes = [8, 128], strides = [1, 1]} : vector<8x384xf32> to vector<8x128xf32>
    %151 = arith.extf %149 : vector<8x128xbf16> to vector<8x128xf32>
    %152 = arith.addf %151, %150 : vector<8x128xf32>
    %153 = arith.negf %152 : vector<8x128xf32>
    %154 = math.exp %153 : vector<8x128xf32>
    %cst_49 = arith.constant 1.000000e+00 : f32
    %155 = vector.broadcast %cst_49 : f32 to vector<8x128xf32>
    %156 = arith.addf %155, %154 : vector<8x128xf32>
    %157 = arith.divf %155, %156 : vector<8x128xf32>
    %158 = arith.index_cast %c3_i32 : i32 to index
    %c0_50 = arith.constant 0 : index
    %c256_51 = arith.constant 256 : index
    %159 = vector.load %arg2[%158, %c0_50, %c256_51] : memref<8x8x384xbf16, #tpu.memory_space<vmem>>, vector<1x8x128xbf16>
    %160 = vector.shape_cast %159 : vector<1x8x128xbf16> to vector<8x128xbf16>
    %161 = vector.extract_strided_slice %135 {offsets = [0, 256], sizes = [8, 128], strides = [1, 1]} : vector<8x384xf32> to vector<8x128xf32>
    %162 = arith.addf %161, %5 : vector<8x128xf32>
    %163 = arith.mulf %146, %162 : vector<8x128xf32>
    %164 = arith.extf %160 : vector<8x128xbf16> to vector<8x128xf32>
    %165 = arith.addf %164, %163 : vector<8x128xf32>
    %166 = math.tanh %165 : vector<8x128xf32>
    %167 = arith.subf %127, %166 : vector<8x128xf32>
    %168 = arith.mulf %157, %167 : vector<8x128xf32>
    %169 = arith.addf %166, %168 : vector<8x128xf32>
    %170 = arith.truncf %169 : vector<8x128xf32> to vector<8x128xbf16>
    %171 = arith.index_cast %c3_i32 : i32 to index
    %c0_52 = arith.constant 0 : index
    %c0_53 = arith.constant 0 : index
    %172 = vector.load %arg5[%171, %c0_52, %c0_53] : memref<8x8x128xbf16, #tpu.memory_space<vmem>>, vector<1x8x128xbf16>
    %173 = vector.shape_cast %172 : vector<1x8x128xbf16> to vector<8x128xbf16>
    %174 = vector.shape_cast %170 : vector<8x128xbf16> to vector<1x8x128xbf16>
    tpu.vector_store %arg5[%171, %c0_52, %c0_53], %174 {strides = array<i32>} : memref<8x8x128xbf16, #tpu.memory_space<vmem>>, vector<1x8x128xbf16>,
    %c4_i32 = arith.constant 4 : i32
    %175 = arith.truncf %169 : vector<8x128xf32> to vector<8x128xbf16>
    %c0_54 = arith.constant 0 : index
    %c0_55 = arith.constant 0 : index
    %176 = vector.load %arg3[%c0_54, %c0_55] : memref<128x384xbf16, #tpu.memory_space<vmem>>, vector<128x384xbf16>
    %cst_56 = arith.constant dense<0.000000e+00> : vector<8x384xf32>
    %177 = tpu.matmul %175, %176, %cst_56 {dimension_numbers = #tpu.dot_dimension_numbers<[1], [0], [0], [1], [0, 0, 1, 1], [], []>} : vector<8x128xbf16>, vector<128x384xbf16>, vector<8x384xf32> -> vector<8x384xf32>
    %178 = arith.index_cast %c4_i32 : i32 to index
    %c0_57 = arith.constant 0 : index
    %c0_58 = arith.constant 0 : index
    %179 = vector.load %arg2[%178, %c0_57, %c0_58] : memref<8x8x384xbf16, #tpu.memory_space<vmem>>, vector<1x8x128xbf16>
    %180 = vector.shape_cast %179 : vector<1x8x128xbf16> to vector<8x128xbf16>
    %181 = vector.extract_strided_slice %177 {offsets = [0, 0], sizes = [8, 128], strides = [1, 1]} : vector<8x384xf32> to vector<8x128xf32>
    %182 = arith.extf %180 : vector<8x128xbf16> to vector<8x128xf32>
    %183 = arith.addf %182, %181 : vector<8x128xf32>
    %184 = arith.negf %183 : vector<8x128xf32>
    %185 = math.exp %184 : vector<8x128xf32>
    %cst_59 = arith.constant 1.000000e+00 : f32
    %186 = vector.broadcast %cst_59 : f32 to vector<8x128xf32>
    %187 = arith.addf %186, %185 : vector<8x128xf32>
    %188 = arith.divf %186, %187 : vector<8x128xf32>
    %189 = arith.index_cast %c4_i32 : i32 to index
    %c0_60 = arith.constant 0 : index
    %c128_61 = arith.constant 128 : index
    %190 = vector.load %arg2[%189, %c0_60, %c128_61] : memref<8x8x384xbf16, #tpu.memory_space<vmem>>, vector<1x8x128xbf16>
    %191 = vector.shape_cast %190 : vector<1x8x128xbf16> to vector<8x128xbf16>
    %192 = vector.extract_strided_slice %177 {offsets = [0, 128], sizes = [8, 128], strides = [1, 1]} : vector<8x384xf32> to vector<8x128xf32>
    %193 = arith.extf %191 : vector<8x128xbf16> to vector<8x128xf32>
    %194 = arith.addf %193, %192 : vector<8x128xf32>
    %195 = arith.negf %194 : vector<8x128xf32>
    %196 = math.exp %195 : vector<8x128xf32>
    %cst_62 = arith.constant 1.000000e+00 : f32
    %197 = vector.broadcast %cst_62 : f32 to vector<8x128xf32>
    %198 = arith.addf %197, %196 : vector<8x128xf32>
    %199 = arith.divf %197, %198 : vector<8x128xf32>
    %200 = arith.index_cast %c4_i32 : i32 to index
    %c0_63 = arith.constant 0 : index
    %c256_64 = arith.constant 256 : index
    %201 = vector.load %arg2[%200, %c0_63, %c256_64] : memref<8x8x384xbf16, #tpu.memory_space<vmem>>, vector<1x8x128xbf16>
    %202 = vector.shape_cast %201 : vector<1x8x128xbf16> to vector<8x128xbf16>
    %203 = vector.extract_strided_slice %177 {offsets = [0, 256], sizes = [8, 128], strides = [1, 1]} : vector<8x384xf32> to vector<8x128xf32>
    %204 = arith.addf %203, %5 : vector<8x128xf32>
    %205 = arith.mulf %188, %204 : vector<8x128xf32>
    %206 = arith.extf %202 : vector<8x128xbf16> to vector<8x128xf32>
    %207 = arith.addf %206, %205 : vector<8x128xf32>
    %208 = math.tanh %207 : vector<8x128xf32>
    %209 = arith.subf %169, %208 : vector<8x128xf32>
    %210 = arith.mulf %199, %209 : vector<8x128xf32>
    %211 = arith.addf %208, %210 : vector<8x128xf32>
    %212 = arith.truncf %211 : vector<8x128xf32> to vector<8x128xbf16>
    %213 = arith.index_cast %c4_i32 : i32 to index
    %c0_65 = arith.constant 0 : index
    %c0_66 = arith.constant 0 : index
    %214 = vector.load %arg5[%213, %c0_65, %c0_66] : memref<8x8x128xbf16, #tpu.memory_space<vmem>>, vector<1x8x128xbf16>
    %215 = vector.shape_cast %214 : vector<1x8x128xbf16> to vector<8x128xbf16>
    %216 = vector.shape_cast %212 : vector<8x128xbf16> to vector<1x8x128xbf16>
    tpu.vector_store %arg5[%213, %c0_65, %c0_66], %216 {strides = array<i32>} : memref<8x8x128xbf16, #tpu.memory_space<vmem>>, vector<1x8x128xbf16>,
    %c5_i32 = arith.constant 5 : i32
    %217 = arith.truncf %211 : vector<8x128xf32> to vector<8x128xbf16>
    %c0_67 = arith.constant 0 : index
    %c0_68 = arith.constant 0 : index
    %218 = vector.load %arg3[%c0_67, %c0_68] : memref<128x384xbf16, #tpu.memory_space<vmem>>, vector<128x384xbf16>
    %cst_69 = arith.constant dense<0.000000e+00> : vector<8x384xf32>
    %219 = tpu.matmul %217, %218, %cst_69 {dimension_numbers = #tpu.dot_dimension_numbers<[1], [0], [0], [1], [0, 0, 1, 1], [], []>} : vector<8x128xbf16>, vector<128x384xbf16>, vector<8x384xf32> -> vector<8x384xf32>
    %220 = arith.index_cast %c5_i32 : i32 to index
    %c0_70 = arith.constant 0 : index
    %c0_71 = arith.constant 0 : index
    %221 = vector.load %arg2[%220, %c0_70, %c0_71] : memref<8x8x384xbf16, #tpu.memory_space<vmem>>, vector<1x8x128xbf16>
    %222 = vector.shape_cast %221 : vector<1x8x128xbf16> to vector<8x128xbf16>
    %223 = vector.extract_strided_slice %219 {offsets = [0, 0], sizes = [8, 128], strides = [1, 1]} : vector<8x384xf32> to vector<8x128xf32>
    %224 = arith.extf %222 : vector<8x128xbf16> to vector<8x128xf32>
    %225 = arith.addf %224, %223 : vector<8x128xf32>
    %226 = arith.negf %225 : vector<8x128xf32>
    %227 = math.exp %226 : vector<8x128xf32>
    %cst_72 = arith.constant 1.000000e+00 : f32
    %228 = vector.broadcast %cst_72 : f32 to vector<8x128xf32>
    %229 = arith.addf %228, %227 : vector<8x128xf32>
    %230 = arith.divf %228, %229 : vector<8x128xf32>
    %231 = arith.index_cast %c5_i32 : i32 to index
    %c0_73 = arith.constant 0 : index
    %c128_74 = arith.constant 128 : index
    %232 = vector.load %arg2[%231, %c0_73, %c128_74] : memref<8x8x384xbf16, #tpu.memory_space<vmem>>, vector<1x8x128xbf16>
    %233 = vector.shape_cast %232 : vector<1x8x128xbf16> to vector<8x128xbf16>
    %234 = vector.extract_strided_slice %219 {offsets = [0, 128], sizes = [8, 128], strides = [1, 1]} : vector<8x384xf32> to vector<8x128xf32>
    %235 = arith.extf %233 : vector<8x128xbf16> to vector<8x128xf32>
    %236 = arith.addf %235, %234 : vector<8x128xf32>
    %237 = arith.negf %236 : vector<8x128xf32>
    %238 = math.exp %237 : vector<8x128xf32>
    %cst_75 = arith.constant 1.000000e+00 : f32
    %239 = vector.broadcast %cst_75 : f32 to vector<8x128xf32>
    %240 = arith.addf %239, %238 : vector<8x128xf32>
    %241 = arith.divf %239, %240 : vector<8x128xf32>
    %242 = arith.index_cast %c5_i32 : i32 to index
    %c0_76 = arith.constant 0 : index
    %c256_77 = arith.constant 256 : index
    %243 = vector.load %arg2[%242, %c0_76, %c256_77] : memref<8x8x384xbf16, #tpu.memory_space<vmem>>, vector<1x8x128xbf16>
    %244 = vector.shape_cast %243 : vector<1x8x128xbf16> to vector<8x128xbf16>
    %245 = vector.extract_strided_slice %219 {offsets = [0, 256], sizes = [8, 128], strides = [1, 1]} : vector<8x384xf32> to vector<8x128xf32>
    %246 = arith.addf %245, %5 : vector<8x128xf32>
    %247 = arith.mulf %230, %246 : vector<8x128xf32>
    %248 = arith.extf %244 : vector<8x128xbf16> to vector<8x128xf32>
    %249 = arith.addf %248, %247 : vector<8x128xf32>
    %250 = math.tanh %249 : vector<8x128xf32>
    %251 = arith.subf %211, %250 : vector<8x128xf32>
    %252 = arith.mulf %241, %251 : vector<8x128xf32>
    %253 = arith.addf %250, %252 : vector<8x128xf32>
    %254 = arith.truncf %253 : vector<8x128xf32> to vector<8x128xbf16>
    %255 = arith.index_cast %c5_i32 : i32 to index
    %c0_78 = arith.constant 0 : index
    %c0_79 = arith.constant 0 : index
    %256 = vector.load %arg5[%255, %c0_78, %c0_79] : memref<8x8x128xbf16, #tpu.memory_space<vmem>>, vector<1x8x128xbf16>
    %257 = vector.shape_cast %256 : vector<1x8x128xbf16> to vector<8x128xbf16>
    %258 = vector.shape_cast %254 : vector<8x128xbf16> to vector<1x8x128xbf16>
    tpu.vector_store %arg5[%255, %c0_78, %c0_79], %258 {strides = array<i32>} : memref<8x8x128xbf16, #tpu.memory_space<vmem>>, vector<1x8x128xbf16>,
    %c6_i32 = arith.constant 6 : i32
    %259 = arith.truncf %253 : vector<8x128xf32> to vector<8x128xbf16>
    %c0_80 = arith.constant 0 : index
    %c0_81 = arith.constant 0 : index
    %260 = vector.load %arg3[%c0_80, %c0_81] : memref<128x384xbf16, #tpu.memory_space<vmem>>, vector<128x384xbf16>
    %cst_82 = arith.constant dense<0.000000e+00> : vector<8x384xf32>
    %261 = tpu.matmul %259, %260, %cst_82 {dimension_numbers = #tpu.dot_dimension_numbers<[1], [0], [0], [1], [0, 0, 1, 1], [], []>} : vector<8x128xbf16>, vector<128x384xbf16>, vector<8x384xf32> -> vector<8x384xf32>
    %262 = arith.index_cast %c6_i32 : i32 to index
    %c0_83 = arith.constant 0 : index
    %c0_84 = arith.constant 0 : index
    %263 = vector.load %arg2[%262, %c0_83, %c0_84] : memref<8x8x384xbf16, #tpu.memory_space<vmem>>, vector<1x8x128xbf16>
    %264 = vector.shape_cast %263 : vector<1x8x128xbf16> to vector<8x128xbf16>
    %265 = vector.extract_strided_slice %261 {offsets = [0, 0], sizes = [8, 128], strides = [1, 1]} : vector<8x384xf32> to vector<8x128xf32>
    %266 = arith.extf %264 : vector<8x128xbf16> to vector<8x128xf32>
    %267 = arith.addf %266, %265 : vector<8x128xf32>
    %268 = arith.negf %267 : vector<8x128xf32>
    %269 = math.exp %268 : vector<8x128xf32>
    %cst_85 = arith.constant 1.000000e+00 : f32
    %270 = vector.broadcast %cst_85 : f32 to vector<8x128xf32>
    %271 = arith.addf %270, %269 : vector<8x128xf32>
    %272 = arith.divf %270, %271 : vector<8x128xf32>
    %273 = arith.index_cast %c6_i32 : i32 to index
    %c0_86 = arith.constant 0 : index
    %c128_87 = arith.constant 128 : index
    %274 = vector.load %arg2[%273, %c0_86, %c128_87] : memref<8x8x384xbf16, #tpu.memory_space<vmem>>, vector<1x8x128xbf16>
    %275 = vector.shape_cast %274 : vector<1x8x128xbf16> to vector<8x128xbf16>
    %276 = vector.extract_strided_slice %261 {offsets = [0, 128], sizes = [8, 128], strides = [1, 1]} : vector<8x384xf32> to vector<8x128xf32>
    %277 = arith.extf %275 : vector<8x128xbf16> to vector<8x128xf32>
    %278 = arith.addf %277, %276 : vector<8x128xf32>
    %279 = arith.negf %278 : vector<8x128xf32>
    %280 = math.exp %279 : vector<8x128xf32>
    %cst_88 = arith.constant 1.000000e+00 : f32
    %281 = vector.broadcast %cst_88 : f32 to vector<8x128xf32>
    %282 = arith.addf %281, %280 : vector<8x128xf32>
    %283 = arith.divf %281, %282 : vector<8x128xf32>
    %284 = arith.index_cast %c6_i32 : i32 to index
    %c0_89 = arith.constant 0 : index
    %c256_90 = arith.constant 256 : index
    %285 = vector.load %arg2[%284, %c0_89, %c256_90] : memref<8x8x384xbf16, #tpu.memory_space<vmem>>, vector<1x8x128xbf16>
    %286 = vector.shape_cast %285 : vector<1x8x128xbf16> to vector<8x128xbf16>
    %287 = vector.extract_strided_slice %261 {offsets = [0, 256], sizes = [8, 128], strides = [1, 1]} : vector<8x384xf32> to vector<8x128xf32>
    %288 = arith.addf %287, %5 : vector<8x128xf32>
    %289 = arith.mulf %272, %288 : vector<8x128xf32>
    %290 = arith.extf %286 : vector<8x128xbf16> to vector<8x128xf32>
    %291 = arith.addf %290, %289 : vector<8x128xf32>
    %292 = math.tanh %291 : vector<8x128xf32>
    %293 = arith.subf %253, %292 : vector<8x128xf32>
    %294 = arith.mulf %283, %293 : vector<8x128xf32>
    %295 = arith.addf %292, %294 : vector<8x128xf32>
    %296 = arith.truncf %295 : vector<8x128xf32> to vector<8x128xbf16>
    %297 = arith.index_cast %c6_i32 : i32 to index
    %c0_91 = arith.constant 0 : index
    %c0_92 = arith.constant 0 : index
    %298 = vector.load %arg5[%297, %c0_91, %c0_92] : memref<8x8x128xbf16, #tpu.memory_space<vmem>>, vector<1x8x128xbf16>
    %299 = vector.shape_cast %298 : vector<1x8x128xbf16> to vector<8x128xbf16>
    %300 = vector.shape_cast %296 : vector<8x128xbf16> to vector<1x8x128xbf16>
    tpu.vector_store %arg5[%297, %c0_91, %c0_92], %300 {strides = array<i32>} : memref<8x8x128xbf16, #tpu.memory_space<vmem>>, vector<1x8x128xbf16>,
    %c7_i32 = arith.constant 7 : i32
    %301 = arith.truncf %295 : vector<8x128xf32> to vector<8x128xbf16>
    %c0_93 = arith.constant 0 : index
    %c0_94 = arith.constant 0 : index
    %302 = vector.load %arg3[%c0_93, %c0_94] : memref<128x384xbf16, #tpu.memory_space<vmem>>, vector<128x384xbf16>
    %cst_95 = arith.constant dense<0.000000e+00> : vector<8x384xf32>
    %303 = tpu.matmul %301, %302, %cst_95 {dimension_numbers = #tpu.dot_dimension_numbers<[1], [0], [0], [1], [0, 0, 1, 1], [], []>} : vector<8x128xbf16>, vector<128x384xbf16>, vector<8x384xf32> -> vector<8x384xf32>
    %304 = arith.index_cast %c7_i32 : i32 to index
    %c0_96 = arith.constant 0 : index
    %c0_97 = arith.constant 0 : index
    %305 = vector.load %arg2[%304, %c0_96, %c0_97] : memref<8x8x384xbf16, #tpu.memory_space<vmem>>, vector<1x8x128xbf16>
    %306 = vector.shape_cast %305 : vector<1x8x128xbf16> to vector<8x128xbf16>
    %307 = vector.extract_strided_slice %303 {offsets = [0, 0], sizes = [8, 128], strides = [1, 1]} : vector<8x384xf32> to vector<8x128xf32>
    %308 = arith.extf %306 : vector<8x128xbf16> to vector<8x128xf32>
    %309 = arith.addf %308, %307 : vector<8x128xf32>
    %310 = arith.negf %309 : vector<8x128xf32>
    %311 = math.exp %310 : vector<8x128xf32>
    %cst_98 = arith.constant 1.000000e+00 : f32
    %312 = vector.broadcast %cst_98 : f32 to vector<8x128xf32>
    %313 = arith.addf %312, %311 : vector<8x128xf32>
    %314 = arith.divf %312, %313 : vector<8x128xf32>
    %315 = arith.index_cast %c7_i32 : i32 to index
    %c0_99 = arith.constant 0 : index
    %c128_100 = arith.constant 128 : index
    %316 = vector.load %arg2[%315, %c0_99, %c128_100] : memref<8x8x384xbf16, #tpu.memory_space<vmem>>, vector<1x8x128xbf16>
    %317 = vector.shape_cast %316 : vector<1x8x128xbf16> to vector<8x128xbf16>
    %318 = vector.extract_strided_slice %303 {offsets = [0, 128], sizes = [8, 128], strides = [1, 1]} : vector<8x384xf32> to vector<8x128xf32>
    %319 = arith.extf %317 : vector<8x128xbf16> to vector<8x128xf32>
    %320 = arith.addf %319, %318 : vector<8x128xf32>
    %321 = arith.negf %320 : vector<8x128xf32>
    %322 = math.exp %321 : vector<8x128xf32>
    %cst_101 = arith.constant 1.000000e+00 : f32
    %323 = vector.broadcast %cst_101 : f32 to vector<8x128xf32>
    %324 = arith.addf %323, %322 : vector<8x128xf32>
    %325 = arith.divf %323, %324 : vector<8x128xf32>
    %326 = arith.index_cast %c7_i32 : i32 to index
    %c0_102 = arith.constant 0 : index
    %c256_103 = arith.constant 256 : index
    %327 = vector.load %arg2[%326, %c0_102, %c256_103] : memref<8x8x384xbf16, #tpu.memory_space<vmem>>, vector<1x8x128xbf16>
    %328 = vector.shape_cast %327 : vector<1x8x128xbf16> to vector<8x128xbf16>
    %329 = vector.extract_strided_slice %303 {offsets = [0, 256], sizes = [8, 128], strides = [1, 1]} : vector<8x384xf32> to vector<8x128xf32>
    %330 = arith.addf %329, %5 : vector<8x128xf32>
    %331 = arith.mulf %314, %330 : vector<8x128xf32>
    %332 = arith.extf %328 : vector<8x128xbf16> to vector<8x128xf32>
    %333 = arith.addf %332, %331 : vector<8x128xf32>
    %334 = math.tanh %333 : vector<8x128xf32>
    %335 = arith.subf %295, %334 : vector<8x128xf32>
    %336 = arith.mulf %325, %335 : vector<8x128xf32>
    %337 = arith.addf %334, %336 : vector<8x128xf32>
    %338 = arith.truncf %337 : vector<8x128xf32> to vector<8x128xbf16>
    %339 = arith.index_cast %c7_i32 : i32 to index
    %c0_104 = arith.constant 0 : index
    %c0_105 = arith.constant 0 : index
    %340 = vector.load %arg5[%339, %c0_104, %c0_105] : memref<8x8x128xbf16, #tpu.memory_space<vmem>>, vector<1x8x128xbf16>
    %341 = vector.shape_cast %340 : vector<1x8x128xbf16> to vector<8x128xbf16>
    %342 = vector.shape_cast %338 : vector<8x128xbf16> to vector<1x8x128xbf16>
    tpu.vector_store %arg5[%339, %c0_104, %c0_105], %342 {strides = array<i32>} : memref<8x8x128xbf16, #tpu.memory_space<vmem>>, vector<1x8x128xbf16>,
    %c8_i32 = arith.constant 8 : i32
    %c0_106 = arith.constant 0 : index
    %c0_107 = arith.constant 0 : index
    %343 = vector.load %arg6[%c0_106, %c0_107] : memref<8x128xf32, #tpu.memory_space<vmem>>, vector<8x128xf32>
    tpu.vector_store %arg6[%c0_106, %c0_107], %337 {strides = array<i32>} : memref<8x128xf32, #tpu.memory_space<vmem>>, vector<8x128xf32>,
    return
  }
  func.func @transform_0(%arg0: i32, %arg1: i32) -> (i32, i32, i32) {
    %c0_i32 = arith.constant 0 : i32
    %c0_i32_0 = arith.constant 0 : i32
    return %arg1, %arg0, %c0_i32 : i32, i32, i32
  }
  func.func @transform_1(%arg0: i32, %arg1: i32) -> (i32, i32) {
    %c0_i32 = arith.constant 0 : i32
    %c0_i32_0 = arith.constant 0 : i32
    %c0_i32_1 = arith.constant 0 : i32
    return %c0_i32, %c0_i32_0 : i32, i32
  }
  func.func @transform_2(%arg0: i32, %arg1: i32) -> (i32, i32) {
    %c0_i32 = arith.constant 0 : i32
    %c0_i32_0 = arith.constant 0 : i32
    %c0_i32_1 = arith.constant 0 : i32
    return %c0_i32, %c0_i32_0 : i32, i32
  }
  func.func @transform_3(%arg0: i32, %arg1: i32) -> (i32, i32, i32) {
    %c0_i32 = arith.constant 0 : i32
    %c0_i32_0 = arith.constant 0 : i32
    return %arg1, %arg0, %c0_i32 : i32, i32, i32
  }
}

</mosaic_0001>

<llo_original>
// kernel: _gru_forward_impl.2
$region0: #{_gru_forward_impl.2}
  #allocation0 [shape = 'u32[]', space=smem, size = 0x4, offset = 0x4, fixed_abs, tag = 'smem constant byte address 0x4 - core index']
  #allocation1 [shape = 'u32[72,128]{1,0:T(1,128)}', space=vmem, size = 0x9000, scoped, tag = 'internal scratch']
  #allocation2 [shape = 'f32[8,128]{1,0:T(8,128)}', space=vmem, size = 0x1000, scoped, tag = 'scratch operand']
  %s0 = inlined_call_operand.vmem [shape: bf16[8,8,384], index: 0, kind: input, shape index: {}]
  %s1 = inlined_call_operand.vmem [shape: bf16[128,384], index: 1, kind: input, shape index: {}]
  %s2 = inlined_call_operand.vmem [shape: f32[1,128], index: 2, kind: input, shape index: {}]
  %s3 = inlined_call_operand.vmem [shape: bf16[8,8,128], index: 3, kind: output, shape index: {}]
  %s4 = sld [smem:[#allocation0]]
  $region26: #{_gru_forward_impl.2} parent=0
    _
  %s6 = ssub.s32 1, %s4
  %s7 = scalar_select 0, %s6, %s4
  // Predicated region
  $region2: #{_gru_forward_impl.2} parent=0 // pred_check
    _
  $region3: #{_gru_forward_impl.2} parent=0 // pred_check_branch
    %9 = sbr.rel (0) target = $region5
  $region4: #{_gru_forward_impl.2} parent=0 // pred_region
    _
  $region5: #{_gru_forward_impl.2} parent=0 // pred_fallthru
    _
  // Predicated region
  $region6: #{_gru_forward_impl.2} parent=0 // pred_check
    _
  $region7: #{_gru_forward_impl.2} parent=0 // pred_check_branch
    %11 = sbr.rel (0) target = $region9
  $region8: #{_gru_forward_impl.2} parent=0 // pred_region
    _
  $region9: #{_gru_forward_impl.2} parent=0 // pred_fallthru
    _
  // Predicated region
  $region10: #{_gru_forward_impl.2} parent=0 // pred_check
    _
  $region11: #{_gru_forward_impl.2} parent=0 // pred_check_branch
    %13 = sbr.rel (0) target = $region13
  $region12: #{_gru_forward_impl.2} parent=0 // pred_region
    _
  $region13: #{_gru_forward_impl.2} parent=0 // pred_fallthru
    _
  %p14 = scmp.eq.s32.totalorder 0, 0
  // Predicated region
  $region14: #{_gru_forward_impl.2} parent=0 // pred_check
    %p15 = pneg %p14
  $region15: #{_gru_forward_impl.2} parent=0 // pred_check_branch
    %17 = sbr.rel (%p15) target = $region17
  $region16: #{_gru_forward_impl.2} parent=0 // pred_region
    %18 = vst [vmem:[#allocation2] sm:$0xff] 0.0
  $region17: #{_gru_forward_impl.2} parent=0 // pred_fallthru
    _
  %v19 = vld [vmem:[%s2] sm:$0x1]
  %v21 = vperm.slane %v19, 0
  %v23 = vld [vmem:[#allocation2] sm:$0xff]
  %v24 = vpack.c.bf16 %v23, %v23
  %v25 = vld [vmem:[%s1] sm:$0xff]
  %v26 = vld [vmem:[%s1 + $0x8] sm:$0xf]
  %v27 = vld [vmem:[%s1 + $0xc] sm:$0xff]
  %v28 = vld [vmem:[%s1 + $0x14] sm:$0xf]
  %v29 = vld [vmem:[%s1 + $0x18] sm:$0xff]
  %v30 = vld [vmem:[%s1 + $0x20] sm:$0xf]
  %v31 = vld [vmem:[%s1 + $0x24] sm:$0xff]
  %v32 = vld [vmem:[%s1 + $0x2c] sm:$0xf]
  %v33 = vld [vmem:[%s1 + $0x30] sm:$0xff]
  %v34 = vld [vmem:[%s1 + $0x38] sm:$0xf]
  %v35 = vld [vmem:[%s1 + $0x3c] sm:$0xff]
  %v36 = vld [vmem:[%s1 + $0x44] sm:$0xf]
  %v37 = vld [vmem:[%s1 + $0x48] sm:$0xff]
  %v38 = vld [vmem:[%s1 + $0x50] sm:$0xf]
  %v39 = vld [vmem:[%s1 + $0x54] sm:$0xff]
  %v40 = vld [vmem:[%s1 + $0x5c] sm:$0xf]
  %v41 = vld [vmem:[%s1 + $0x60] sm:$0xff]
  %v42 = vld [vmem:[%s1 + $0x68] sm:$0xf]
  %v43 = vld [vmem:[%s1 + $0x6c] sm:$0xff]
  %v44 = vld [vmem:[%s1 + $0x74] sm:$0xf]
  %v45 = vld [vmem:[%s1 + $0x78] sm:$0xff]
  %v46 = vld [vmem:[%s1 + $0x80] sm:$0xf]
  %v47 = vld [vmem:[%s1 + $0x84] sm:$0xff]
  %v48 = vld [vmem:[%s1 + $0x8c] sm:$0xf]
  %v49 = vld [vmem:[%s1 + $0x90] sm:$0xff]
  %v50 = vld [vmem:[%s1 + $0x98] sm:$0xf]
  %v51 = vld [vmem:[%s1 + $0x9c] sm:$0xff]
  %v52 = vld [vmem:[%s1 + $0xa4] sm:$0xf]
  %v53 = vld [vmem:[%s1 + $0xa8] sm:$0xff]
  %v54 = vld [vmem:[%s1 + $0xb0] sm:$0xf]
  %v55 = vld [vmem:[%s1 + $0xb4] sm:$0xff]
  %v56 = vld [vmem:[%s1 + $0xbc] sm:$0xf]
  %v89 = vunpack.c.l.b16 %v25
  %v90 = vunpack.c.h.b16 %v25
  %v91 = vunpack.c.l.b16 %v26
  %v92 = vunpack.c.l.b16 %v27
  %v93 = vunpack.c.h.b16 %v27
  %v94 = vunpack.c.l.b16 %v28
  %v95 = vunpack.c.l.b16 %v29
  %v96 = vunpack.c.h.b16 %v29
  %v97 = vunpack.c.l.b16 %v30
  %v98 = vunpack.c.l.b16 %v31
  %v99 = vunpack.c.h.b16 %v31
  %v100 = vunpack.c.l.b16 %v32
  %v101 = vunpack.c.l.b16 %v33
  %v102 = vunpack.c.h.b16 %v33
  %v103 = vunpack.c.l.b16 %v34
  %v104 = vunpack.c.l.b16 %v35
  %v105 = vunpack.c.h.b16 %v35
  %v106 = vunpack.c.l.b16 %v36
  %v107 = vunpack.c.l.b16 %v37
  %v108 = vunpack.c.h.b16 %v37
  %v109 = vunpack.c.l.b16 %v38
  %v110 = vunpack.c.l.b16 %v39
  %v111 = vunpack.c.h.b16 %v39
  %v112 = vunpack.c.l.b16 %v40
  %v113 = vunpack.c.l.b16 %v41
  %v114 = vunpack.c.h.b16 %v41
  %v115 = vunpack.c.l.b16 %v42
  %v116 = vunpack.c.l.b16 %v43
  %v117 = vunpack.c.h.b16 %v43
  %v118 = vunpack.c.l.b16 %v44
  %v119 = vunpack.c.l.b16 %v45
  %v120 = vunpack.c.h.b16 %v45
  %v121 = vunpack.c.l.b16 %v46
  %v122 = vunpack.c.l.b16 %v47
  %v123 = vunpack.c.h.b16 %v47
  %v124 = vunpack.c.l.b16 %v48
  %v125 = vunpack.c.l.b16 %v49
  %v126 = vunpack.c.h.b16 %v49
  %v127 = vunpack.c.l.b16 %v50
  %v128 = vunpack.c.l.b16 %v51
  %v129 = vunpack.c.h.b16 %v51
  %v130 = vunpack.c.l.b16 %v52
  %v131 = vunpack.c.l.b16 %v53
  %v132 = vunpack.c.h.b16 %v53
  %v133 = vunpack.c.l.b16 %v54
  %v134 = vunpack.c.l.b16 %v55
  %v135 = vunpack.c.h.b16 %v55
  %v136 = vunpack.c.l.b16 %v56
  %v137 = vpack.c.b16 %v92, %v89
  %v138 = vpack.c.b16 %v93, %v90
  %v139 = vpack.c.b16 %v94, %v91
  %v140 = vpack.c.b16 %v98, %v95
  %v141 = vpack.c.b16 %v99, %v96
  %v142 = vpack.c.b16 %v100, %v97
  %v143 = vpack.c.b16 %v104, %v101
  %v144 = vpack.c.b16 %v105, %v102
  %v145 = vpack.c.b16 %v106, %v103
  %v146 = vpack.c.b16 %v110, %v107
  %v147 = vpack.c.b16 %v111, %v108
  %v148 = vpack.c.b16 %v112, %v109
  %v149 = vpack.c.b16 %v116, %v113
  %v150 = vpack.c.b16 %v117, %v114
  %v151 = vpack.c.b16 %v118, %v115
  %v152 = vpack.c.b16 %v122, %v119
  %v153 = vpack.c.b16 %v123, %v120
  %v154 = vpack.c.b16 %v124, %v121
  %v155 = vpack.c.b16 %v128, %v125
  %v156 = vpack.c.b16 %v129, %v126
  %v157 = vpack.c.b16 %v130, %v127
  %v158 = vpack.c.b16 %v134, %v131
  %v159 = vpack.c.b16 %v135, %v132
  %v160 = vpack.c.b16 %v136, %v133
  %185 = vmatpush.bf16.msra.mxu0 %v158
  %186 = vmatpush.bf16.msra.mxu0 %v155
  %187 = vmatpush.bf16.msra.mxu0 %v152
  %188 = vmatpush.bf16.msra.mxu0 %v149
  %189 = vmatpush.bf16.msra.mxu0 %v146
  %190 = vmatpush.bf16.msra.mxu0 %v143
  %191 = vmatpush.bf16.msra.mxu0 %v140
  %192 = vmatpush.bf16.msra.mxu0 %v137
  %193 = vmatmul.bf16.gmra.mxu0 %v24
  %v194 = vpop.f32.mrf.mxu0
  %v195 = vadd.f32 0.0, %v194
  %v196 = vpop.f32.mrf.mxu0
  %197 = vdwg.mxu0
  %198 = vmatpush.bf16.msra.mxu0 %v159
  %199 = vmatpush.bf16.msra.mxu0 %v156
  %200 = vmatpush.bf16.msra.mxu0 %v153
  %201 = vmatpush.bf16.msra.mxu0 %v150
  %202 = vmatpush.bf16.msra.mxu0 %v147
  %203 = vmatpush.bf16.msra.mxu0 %v144
  %204 = vmatpush.bf16.msra.mxu0 %v141
  %205 = vmatpush.bf16.msra.mxu0 %v138
  %206 = vmatmul.bf16.gmra.mxu0 %v24
  %v207 = vpop.f32.mrf.mxu0
  %v208 = vadd.f32 0.0, %v207
  %v209 = vpop.f32.mrf.mxu0
  %210 = vdwg.mxu0
  %211 = vmatpush.bf16.msra.mxu0 %v160
  %212 = vmatpush.bf16.msra.mxu0 %v157
  %213 = vmatpush.bf16.msra.mxu0 %v154
  %214 = vmatpush.bf16.msra.mxu0 %v151
  %215 = vmatpush.bf16.msra.mxu0 %v148
  %216 = vmatpush.bf16.msra.mxu0 %v145
  %217 = vmatpush.bf16.msra.mxu0 %v142
  %218 = vmatpush.bf16.msra.mxu0 %v139
  %219 = vmatmul.bf16.gmra.mxu0 %v24
  %v220 = vpop.f32.mrf.mxu0
  %v221 = vadd.f32 0.0, %v220
  %v222 = vpop.f32.mrf.mxu0
  %223 = vdwg.mxu0
  %v224 = vld [vmem:[%s0] sm:$0xf]
  %v225 = vunpack.c.l.bf16 %v224
  %v226 = vadd.f32 %v225, %v195
  %v227 = vxor.u32 %v226, 2147483648
  %v228 = vmul.f32 %v227, 1.442695
  %v229 = vpow.pop %v228
  %v230 = vadd.f32 %v229, 1.0
  %v231 = vrcp.pop %v230
  %v232 = vmul.f32 %v230, %v231
  %v233 = vsub.f32 1.0, %v232
  %v234 = vmul.f32 %v231, %v233
  %v235 = vadd.f32 %v231, %v234
  %vm236 = vweird.f32 %v230
  %vm237 = vweird.f32 %v231
  %vm238 = vmor %vm236, %vm237
  %v239 = vsel %vm238, %v231, %v235
  %v240 = vand.u32 2147483647, %v230
  %vm241 = vcmp.eq.f32.partialorder %v240, 8.507059e+37
  %v242 = vand.u32 %v230, 2147483648
  %v243 = vor.u32 1.1754944e-38, %v242
  %v244 = vsel %vm241, %v243, %v239
  %v245 = vmul.f32 1.0, %v244
  %v246 = vld [vmem:[%s0 + $0x4] sm:$0xf]
  %v247 = vunpack.c.l.bf16 %v246
  %v248 = vadd.f32 %v247, %v208
  %v249 = vxor.u32 %v248, 2147483648
  %v250 = vmul.f32 %v249, 1.442695
  %v251 = vpow.pop %v250
  %v252 = vadd.f32 %v251, 1.0
  %v253 = vrcp.pop %v252
  %v254 = vmul.f32 %v252, %v253
  %v255 = vsub.f32 1.0, %v254
  %v256 = vmul.f32 %v253, %v255
  %v257 = vadd.f32 %v253, %v256
  %vm258 = vweird.f32 %v252
  %vm259 = vweird.f32 %v253
  %vm260 = vmor %vm258, %vm259
  %v261 = vsel %vm260, %v253, %v257
  %v262 = vand.u32 2147483647, %v252
  %vm263 = vcmp.eq.f32.partialorder %v262, 8.507059e+37
  %v264 = vand.u32 %v252, 2147483648
  %v265 = vor.u32 1.1754944e-38, %v264
  %v266 = vsel %vm263, %v265, %v261
  %v267 = vmul.f32 1.0, %v266
  %v268 = vld [vmem:[%s0 + $0x8] sm:$0xf]
  %v269 = vadd.f32 %v221, %v21
  %v270 = vmul.f32 %v245, %v269
  %v271 = vunpack.c.l.bf16 %v268
  %v272 = vadd.f32 %v271, %v270
  %v273 = vtanh.pop %v272
  %v274 = vsub.f32 %v23, %v273
  %v275 = vmul.f32 %v267, %v274
  %v276 = vadd.f32 %v273, %v275
  %v277 = vpack.c.bf16 %v276, %v276
  %278 = vst [vmem:[%s3] sm:$0xf] %v277
  %v279 = vld [vmem:[%s1] sm:$0xff]
  %v280 = vld [vmem:[%s1 + $0x8] sm:$0xf]
  %v281 = vld [vmem:[%s1 + $0xc] sm:$0xff]
  %v282 = vld [vmem:[%s1 + $0x14] sm:$0xf]
  %v283 = vld [vmem:[%s1 + $0x18] sm:$0xff]
  %v284 = vld [vmem:[%s1 + $0x20] sm:$0xf]
  %v285 = vld [vmem:[%s1 + $0x24] sm:$0xff]
  %v286 = vld [vmem:[%s1 + $0x2c] sm:$0xf]
  %v287 = vld [vmem:[%s1 + $0x30] sm:$0xff]
  %v288 = vld [vmem:[%s1 + $0x38] sm:$0xf]
  %v289 = vld [vmem:[%s1 + $0x3c] sm:$0xff]
  %v290 = vld [vmem:[%s1 + $0x44] sm:$0xf]
  %v291 = vld [vmem:[%s1 + $0x48] sm:$0xff]
  %v292 = vld [vmem:[%s1 + $0x50] sm:$0xf]
  %v293 = vld [vmem:[%s1 + $0x54] sm:$0xff]
  %v294 = vld [vmem:[%s1 + $0x5c] sm:$0xf]
  %v295 = vld [vmem:[%s1 + $0x60] sm:$0xff]
  %v296 = vld [vmem:[%s1 + $0x68] sm:$0xf]
  %v297 = vld [vmem:[%s1 + $0x6c] sm:$0xff]
  %v298 = vld [vmem:[%s1 + $0x74] sm:$0xf]
  %v299 = vld [vmem:[%s1 + $0x78] sm:$0xff]
  %v300 = vld [vmem:[%s1 + $0x80] sm:$0xf]
  %v301 = vld [vmem:[%s1 + $0x84] sm:$0xff]
  %v302 = vld [vmem:[%s1 + $0x8c] sm:$0xf]
  %v303 = vld [vmem:[%s1 + $0x90] sm:$0xff]
  %v304 = vld [vmem:[%s1 + $0x98] sm:$0xf]
  %v305 = vld [vmem:[%s1 + $0x9c] sm:$0xff]
  %v306 = vld [vmem:[%s1 + $0xa4] sm:$0xf]
  %v307 = vld [vmem:[%s1 + $0xa8] sm:$0xff]
  %v308 = vld [vmem:[%s1 + $0xb0] sm:$0xf]
  %v309 = vld [vmem:[%s1 + $0xb4] sm:$0xff]
  %v310 = vld [vmem:[%s1 + $0xbc] sm:$0xf]
  %v343 = vunpack.c.l.b16 %v279
  %v344 = vunpack.c.h.b16 %v279
  %v345 = vunpack.c.l.b16 %v280
  %v346 = vunpack.c.l.b16 %v281
  %v347 = vunpack.c.h.b16 %v281
  %v348 = vunpack.c.l.b16 %v282
  %v349 = vunpack.c.l.b16 %v283
  %v350 = vunpack.c.h.b16 %v283
  %v351 = vunpack.c.l.b16 %v284
  %v352 = vunpack.c.l.b16 %v285
  %v353 = vunpack.c.h.b16 %v285
  %v354 = vunpack.c.l.b16 %v286
  %v355 = vunpack.c.l.b16 %v287
  %v356 = vunpack.c.h.b16 %v287
  %v357 = vunpack.c.l.b16 %v288
  %v358 = vunpack.c.l.b16 %v289
  %v359 = vunpack.c.h.b16 %v289
  %v360 = vunpack.c.l.b16 %v290
  %v361 = vunpack.c.l.b16 %v291
  %v362 = vunpack.c.h.b16 %v291
  %v363 = vunpack.c.l.b16 %v292
  %v364 = vunpack.c.l.b16 %v293
  %v365 = vunpack.c.h.b16 %v293
  %v366 = vunpack.c.l.b16 %v294
  %v367 = vunpack.c.l.b16 %v295
  %v368 = vunpack.c.h.b16 %v295
  %v369 = vunpack.c.l.b16 %v296
  %v370 = vunpack.c.l.b16 %v297
  %v371 = vunpack.c.h.b16 %v297
  %v372 = vunpack.c.l.b16 %v298
  %v373 = vunpack.c.l.b16 %v299
  %v374 = vunpack.c.h.b16 %v299
  %v375 = vunpack.c.l.b16 %v300
  %v376 = vunpack.c.l.b16 %v301
  %v377 = vunpack.c.h.b16 %v301
  %v378 = vunpack.c.l.b16 %v302
  %v379 = vunpack.c.l.b16 %v303
  %v380 = vunpack.c.h.b16 %v303
  %v381 = vunpack.c.l.b16 %v304
  %v382 = vunpack.c.l.b16 %v305
  %v383 = vunpack.c.h.b16 %v305
  %v384 = vunpack.c.l.b16 %v306
  %v385 = vunpack.c.l.b16 %v307
  %v386 = vunpack.c.h.b16 %v307
  %v387 = vunpack.c.l.b16 %v308
  %v388 = vunpack.c.l.b16 %v309
  %v389 = vunpack.c.h.b16 %v309
  %v390 = vunpack.c.l.b16 %v310
  %v391 = vpack.c.b16 %v346, %v343
  %v392 = vpack.c.b16 %v347, %v344
  %v393 = vpack.c.b16 %v348, %v345
  %v394 = vpack.c.b16 %v352, %v349
  %v395 = vpack.c.b16 %v353, %v350
  %v396 = vpack.c.b16 %v354, %v351
  %v397 = vpack.c.b16 %v358, %v355
  %v398 = vpack.c.b16 %v359, %v356
  %v399 = vpack.c.b16 %v360, %v357
  %v400 = vpack.c.b16 %v364, %v361
  %v401 = vpack.c.b16 %v365, %v362
  %v402 = vpack.c.b16 %v366, %v363
  %v403 = vpack.c.b16 %v370, %v367
  %v404 = vpack.c.b16 %v371, %v368
  %v405 = vpack.c.b16 %v372, %v369
  %v406 = vpack.c.b16 %v376, %v373
  %v407 = vpack.c.b16 %v377, %v374
  %v408 = vpack.c.b16 %v378, %v375
  %v409 = vpack.c.b16 %v382, %v379
  %v410 = vpack.c.b16 %v383, %v380
  %v411 = vpack.c.b16 %v384, %v381
  %v412 = vpack.c.b16 %v388, %v385
  %v413 = vpack.c.b16 %v389, %v386
  %v414 = vpack.c.b16 %v390, %v387
  %439 = vmatpush.bf16.msra.mxu0 %v412
  %440 = vmatpush.bf16.msra.mxu0 %v409
  %441 = vmatpush.bf16.msra.mxu0 %v406
  %442 = vmatpush.bf16.msra.mxu0 %v403
  %443 = vmatpush.bf16.msra.mxu0 %v400
  %444 = vmatpush.bf16.msra.mxu0 %v397
  %445 = vmatpush.bf16.msra.mxu0 %v394
  %446 = vmatpush.bf16.msra.mxu0 %v391
  %447 = vmatmul.bf16.gmra.mxu0 %v277
  %v448 = vpop.f32.mrf.mxu0
  %v449 = vadd.f32 0.0, %v448
  %v450 = vpop.f32.mrf.mxu0
  %451 = vdwg.mxu0
  %452 = vmatpush.bf16.msra.mxu0 %v413
  %453 = vmatpush.bf16.msra.mxu0 %v410
  %454 = vmatpush.bf16.msra.mxu0 %v407
  %455 = vmatpush.bf16.msra.mxu0 %v404
  %456 = vmatpush.bf16.msra.mxu0 %v401
  %457 = vmatpush.bf16.msra.mxu0 %v398
  %458 = vmatpush.bf16.msra.mxu0 %v395
  %459 = vmatpush.bf16.msra.mxu0 %v392
  %460 = vmatmul.bf16.gmra.mxu0 %v277
  %v461 = vpop.f32.mrf.mxu0
  %v462 = vadd.f32 0.0, %v461
  %v463 = vpop.f32.mrf.mxu0
  %464 = vdwg.mxu0
  %465 = vmatpush.bf16.msra.mxu0 %v414
  %466 = vmatpush.bf16.msra.mxu0 %v411
  %467 = vmatpush.bf16.msra.mxu0 %v408
  %468 = vmatpush.bf16.msra.mxu0 %v405
  %469 = vmatpush.bf16.msra.mxu0 %v402
  %470 = vmatpush.bf16.msra.mxu0 %v399
  %471 = vmatpush.bf16.msra.mxu0 %v396
  %472 = vmatpush.bf16.msra.mxu0 %v393
  %473 = vmatmul.bf16.gmra.mxu0 %v277
  %v474 = vpop.f32.mrf.mxu0
  %v475 = vadd.f32 0.0, %v474
  %v476 = vpop.f32.mrf.mxu0
  %477 = vdwg.mxu0
  %s478 = scalar_lea.vmem %s0, 12
  %v479 = vld [vmem:[%s478] sm:$0xf]
  %v480 = vunpack.c.l.bf16 %v479
  %v481 = vadd.f32 %v480, %v449
  %v482 = vxor.u32 %v481, 2147483648
  %v483 = vmul.f32 %v482, 1.442695
  %v484 = vpow.pop %v483
  %v485 = vadd.f32 %v484, 1.0
  %v486 = vrcp.pop %v485
  %v487 = vmul.f32 %v485, %v486
  %v488 = vsub.f32 1.0, %v487
  %v489 = vmul.f32 %v486, %v488
  %v490 = vadd.f32 %v486, %v489
  %vm491 = vweird.f32 %v485
  %vm492 = vweird.f32 %v486
  %vm493 = vmor %vm491, %vm492
  %v494 = vsel %vm493, %v486, %v490
  %v495 = vand.u32 2147483647, %v485
  %vm496 = vcmp.eq.f32.partialorder %v495, 8.507059e+37
  %v497 = vand.u32 %v485, 2147483648
  %v498 = vor.u32 1.1754944e-38, %v497
  %v499 = vsel %vm496, %v498, %v494
  %v500 = vmul.f32 1.0, %v499
  %v501 = vld [vmem:[%s478 + $0x4] sm:$0xf]
  %v502 = vunpack.c.l.bf16 %v501
  %v503 = vadd.f32 %v502, %v462
  %v504 = vxor.u32 %v503, 2147483648
  %v505 = vmul.f32 %v504, 1.442695
  %v506 = vpow.pop %v505
  %v507 = vadd.f32 %v506, 1.0
  %v508 = vrcp.pop %v507
  %v509 = vmul.f32 %v507, %v508
  %v510 = vsub.f32 1.0, %v509
  %v511 = vmul.f32 %v508, %v510
  %v512 = vadd.f32 %v508, %v511
  %vm513 = vweird.f32 %v507
  %vm514 = vweird.f32 %v508
  %vm515 = vmor %vm513, %vm514
  %v516 = vsel %vm515, %v508, %v512
  %v517 = vand.u32 2147483647, %v507
  %vm518 = vcmp.eq.f32.partialorder %v517, 8.507059e+37
  %v519 = vand.u32 %v507, 2147483648
  %v520 = vor.u32 1.1754944e-38, %v519
  %v521 = vsel %vm518, %v520, %v516
  %v522 = vmul.f32 1.0, %v521
  %v523 = vld [vmem:[%s478 + $0x8] sm:$0xf]
  %v524 = vadd.f32 %v475, %v21
  %v525 = vmul.f32 %v500, %v524
  %v526 = vunpack.c.l.bf16 %v523
  %v527 = vadd.f32 %v526, %v525
  %v528 = vtanh.pop %v527
  %v529 = vsub.f32 %v276, %v528
  %v530 = vmul.f32 %v522, %v529
  %v531 = vadd.f32 %v528, %v530
  %v532 = vpack.c.bf16 %v531, %v531
  %s533 = scalar_lea.vmem %s3, 4
  %534 = vst [vmem:[%s533] sm:$0xf] %v532
  %v535 = vld [vmem:[%s1] sm:$0xff]
  %v536 = vld [vmem:[%s1 + $0x8] sm:$0xf]
  %v537 = vld [vmem:[%s1 + $0xc] sm:$0xff]
  %v538 = vld [vmem:[%s1 + $0x14] sm:$0xf]
  %v539 = vld [vmem:[%s1 + $0x18] sm:$0xff]
  %v540 = vld [vmem:[%s1 + $0x20] sm:$0xf]
  %v541 = vld [vmem:[%s1 + $0x24] sm:$0xff]
  %v542 = vld [vmem:[%s1 + $0x2c] sm:$0xf]
  %v543 = vld [vmem:[%s1 + $0x30] sm:$0xff]
  %v544 = vld [vmem:[%s1 + $0x38] sm:$0xf]
  %v545 = vld [vmem:[%s1 + $0x3c] sm:$0xff]
  %v546 = vld [vmem:[%s1 + $0x44] sm:$0xf]
  %v547 = vld [vmem:[%s1 + $0x48] sm:$0xff]
  %v548 = vld [vmem:[%s1 + $0x50] sm:$0xf]
  %v549 = vld [vmem:[%s1 + $0x54] sm:$0xff]
  %v550 = vld [vmem:[%s1 + $0x5c] sm:$0xf]
  %v551 = vld [vmem:[%s1 + $0x60] sm:$0xff]
  %v552 = vld [vmem:[%s1 + $0x68] sm:$0xf]
  %v553 = vld [vmem:[%s1 + $0x6c] sm:$0xff]
  %v554 = vld [vmem:[%s1 + $0x74] sm:$0xf]
  %v555 = vld [vmem:[%s1 + $0x78] sm:$0xff]
  %v556 = vld [vmem:[%s1 + $0x80] sm:$0xf]
  %v557 = vld [vmem:[%s1 + $0x84] sm:$0xff]
  %v558 = vld [vmem:[%s1 + $0x8c] sm:$0xf]
  %v559 = vld [vmem:[%s1 + $0x90] sm:$0xff]
  %v560 = vld [vmem:[%s1 + $0x98] sm:$0xf]
  %v561 = vld [vmem:[%s1 + $0x9c] sm:$0xff]
  %v562 = vld [vmem:[%s1 + $0xa4] sm:$0xf]
  %v563 = vld [vmem:[%s1 + $0xa8] sm:$0xff]
  %v564 = vld [vmem:[%s1 + $0xb0] sm:$0xf]
  %v565 = vld [vmem:[%s1 + $0xb4] sm:$0xff]
  %v566 = vld [vmem:[%s1 + $0xbc] sm:$0xf]
  %v599 = vunpack.c.l.b16 %v535
  %v600 = vunpack.c.h.b16 %v535
  %v601 = vunpack.c.l.b16 %v536
  %v602 = vunpack.c.l.b16 %v537
  %v603 = vunpack.c.h.b16 %v537
  %v604 = vunpack.c.l.b16 %v538
  %v605 = vunpack.c.l.b16 %v539
  %v606 = vunpack.c.h.b16 %v539
  %v607 = vunpack.c.l.b16 %v540
  %v608 = vunpack.c.l.b16 %v541
  %v609 = vunpack.c.h.b16 %v541
  %v610 = vunpack.c.l.b16 %v542
  %v611 = vunpack.c.l.b16 %v543
  %v612 = vunpack.c.h.b16 %v543
  %v613 = vunpack.c.l.b16 %v544
  %v614 = vunpack.c.l.b16 %v545
  %v615 = vunpack.c.h.b16 %v545
  %v616 = vunpack.c.l.b16 %v546
  %v617 = vunpack.c.l.b16 %v547
  %v618 = vunpack.c.h.b16 %v547
  %v619 = vunpack.c.l.b16 %v548
  %v620 = vunpack.c.l.b16 %v549
  %v621 = vunpack.c.h.b16 %v549
  %v622 = vunpack.c.l.b16 %v550
  %v623 = vunpack.c.l.b16 %v551
  %v624 = vunpack.c.h.b16 %v551
  %v625 = vunpack.c.l.b16 %v552
  %v626 = vunpack.c.l.b16 %v553
  %v627 = vunpack.c.h.b16 %v553
  %v628 = vunpack.c.l.b16 %v554
  %v629 = vunpack.c.l.b16 %v555
  %v630 = vunpack.c.h.b16 %v555
  %v631 = vunpack.c.l.b16 %v556
  %v632 = vunpack.c.l.b16 %v557
  %v633 = vunpack.c.h.b16 %v557
  %v634 = vunpack.c.l.b16 %v558
  %v635 = vunpack.c.l.b16 %v559
  %v636 = vunpack.c.h.b16 %v559
  %v637 = vunpack.c.l.b16 %v560
  %v638 = vunpack.c.l.b16 %v561
  %v639 = vunpack.c.h.b16 %v561
  %v640 = vunpack.c.l.b16 %v562
  %v641 = vunpack.c.l.b16 %v563
  %v642 = vunpack.c.h.b16 %v563
  %v643 = vunpack.c.l.b16 %v564
  %v644 = vunpack.c.l.b16 %v565
  %v645 = vunpack.c.h.b16 %v565
  %v646 = vunpack.c.l.b16 %v566
  %v647 = vpack.c.b16 %v602, %v599
  %v648 = vpack.c.b16 %v603, %v600
  %v649 = vpack.c.b16 %v604, %v601
  %v650 = vpack.c.b16 %v608, %v605
  %v651 = vpack.c.b16 %v609, %v606
  %v652 = vpack.c.b16 %v610, %v607
  %v653 = vpack.c.b16 %v614, %v611
  %v654 = vpack.c.b16 %v615, %v612
  %v655 = vpack.c.b16 %v616, %v613
  %v656 = vpack.c.b16 %v620, %v617
  %v657 = vpack.c.b16 %v621, %v618
  %v658 = vpack.c.b16 %v622, %v619
  %v659 = vpack.c.b16 %v626, %v623
  %v660 = vpack.c.b16 %v627, %v624
  %v661 = vpack.c.b16 %v628, %v625
  %v662 = vpack.c.b16 %v632, %v629
  %v663 = vpack.c.b16 %v633, %v630
  %v664 = vpack.c.b16 %v634, %v631
  %v665 = vpack.c.b16 %v638, %v635
  %v666 = vpack.c.b16 %v639, %v636
  %v667 = vpack.c.b16 %v640, %v637
  %v668 = vpack.c.b16 %v644, %v641
  %v669 = vpack.c.b16 %v645, %v642
  %v670 = vpack.c.b16 %v646, %v643
  %695 = vmatpush.bf16.msra.mxu0 %v668
  %696 = vmatpush.bf16.msra.mxu0 %v665
  %697 = vmatpush.bf16.msra.mxu0 %v662
  %698 = vmatpush.bf16.msra.mxu0 %v659
  %699 = vmatpush.bf16.msra.mxu0 %v656
  %700 = vmatpush.bf16.msra.mxu0 %v653
  %701 = vmatpush.bf16.msra.mxu0 %v650
  %702 = vmatpush.bf16.msra.mxu0 %v647
  %703 = vmatmul.bf16.gmra.mxu0 %v532
  %v704 = vpop.f32.mrf.mxu0
  %v705 = vadd.f32 0.0, %v704
  %v706 = vpop.f32.mrf.mxu0
  %707 = vdwg.mxu0
  %708 = vmatpush.bf16.msra.mxu0 %v669
  %709 = vmatpush.bf16.msra.mxu0 %v666
  %710 = vmatpush.bf16.msra.mxu0 %v663
  %711 = vmatpush.bf16.msra.mxu0 %v660
  %712 = vmatpush.bf16.msra.mxu0 %v657
  %713 = vmatpush.bf16.msra.mxu0 %v654
  %714 = vmatpush.bf16.msra.mxu0 %v651
  %715 = vmatpush.bf16.msra.mxu0 %v648
  %716 = vmatmul.bf16.gmra.mxu0 %v532
  %v717 = vpop.f32.mrf.mxu0
  %v718 = vadd.f32 0.0, %v717
  %v719 = vpop.f32.mrf.mxu0
  %720 = vdwg.mxu0
  %721 = vmatpush.bf16.msra.mxu0 %v670
  %722 = vmatpush.bf16.msra.mxu0 %v667
  %723 = vmatpush.bf16.msra.mxu0 %v664
  %724 = vmatpush.bf16.msra.mxu0 %v661
  %725 = vmatpush.bf16.msra.mxu0 %v658
  %726 = vmatpush.bf16.msra.mxu0 %v655
  %727 = vmatpush.bf16.msra.mxu0 %v652
  %728 = vmatpush.bf16.msra.mxu0 %v649
  %729 = vmatmul.bf16.gmra.mxu0 %v532
  %v730 = vpop.f32.mrf.mxu0
  %v731 = vadd.f32 0.0, %v730
  %v732 = vpop.f32.mrf.mxu0
  %733 = vdwg.mxu0
  %s734 = scalar_lea.vmem %s0, 24
  %v735 = vld [vmem:[%s734] sm:$0xf]
  %v736 = vunpack.c.l.bf16 %v735
  %v737 = vadd.f32 %v736, %v705
  %v738 = vxor.u32 %v737, 2147483648
  %v739 = vmul.f32 %v738, 1.442695
  %v740 = vpow.pop %v739
  %v741 = vadd.f32 %v740, 1.0
  %v742 = vrcp.pop %v741
  %v743 = vmul.f32 %v741, %v742
  %v744 = vsub.f32 1.0, %v743
  %v745 = vmul.f32 %v742, %v744
  %v746 = vadd.f32 %v742, %v745
  %vm747 = vweird.f32 %v741
  %vm748 = vweird.f32 %v742
  %vm749 = vmor %vm747, %vm748
  %v750 = vsel %vm749, %v742, %v746
  %v751 = vand.u32 2147483647, %v741
  %vm752 = vcmp.eq.f32.partialorder %v751, 8.507059e+37
  %v753 = vand.u32 %v741, 2147483648
  %v754 = vor.u32 1.1754944e-38, %v753
  %v755 = vsel %vm752, %v754, %v750
  %v756 = vmul.f32 1.0, %v755
  %v757 = vld [vmem:[%s734 + $0x4] sm:$0xf]
  %v758 = vunpack.c.l.bf16 %v757
  %v759 = vadd.f32 %v758, %v718
  %v760 = vxor.u32 %v759, 2147483648
  %v761 = vmul.f32 %v760, 1.442695
  %v762 = vpow.pop %v761
  %v763 = vadd.f32 %v762, 1.0
  %v764 = vrcp.pop %v763
  %v765 = vmul.f32 %v763, %v764
  %v766 = vsub.f32 1.0, %v765
  %v767 = vmul.f32 %v764, %v766
  %v768 = vadd.f32 %v764, %v767
  %vm769 = vweird.f32 %v763
  %vm770 = vweird.f32 %v764
  %vm771 = vmor %vm769, %vm770
  %v772 = vsel %vm771, %v764, %v768
  %v773 = vand.u32 2147483647, %v763
  %vm774 = vcmp.eq.f32.partialorder %v773, 8.507059e+37
  %v775 = vand.u32 %v763, 2147483648
  %v776 = vor.u32 1.1754944e-38, %v775
  %v777 = vsel %vm774, %v776, %v772
  %v778 = vmul.f32 1.0, %v777
  %v779 = vld [vmem:[%s734 + $0x8] sm:$0xf]
  %v780 = vadd.f32 %v731, %v21
  %v781 = vmul.f32 %v756, %v780
  %v782 = vunpack.c.l.bf16 %v779
  %v783 = vadd.f32 %v782, %v781
  %v784 = vtanh.pop %v783
  %v785 = vsub.f32 %v531, %v784
  %v786 = vmul.f32 %v778, %v785
  %v787 = vadd.f32 %v784, %v786
  %v788 = vpack.c.bf16 %v787, %v787
  %s789 = scalar_lea.vmem %s3, 8
  %790 = vst [vmem:[%s789] sm:$0xf] %v788
  %v791 = vld [vmem:[%s1] sm:$0xff]
  %v792 = vld [vmem:[%s1 + $0x8] sm:$0xf]
  %v793 = vld [vmem:[%s1 + $0xc] sm:$0xff]
  %v794 = vld [vmem:[%s1 + $0x14] sm:$0xf]
  %v795 = vld [vmem:[%s1 + $0x18] sm:$0xff]
  %v796 = vld [vmem:[%s1 + $0x20] sm:$0xf]
  %v797 = vld [vmem:[%s1 + $0x24] sm:$0xff]
  %v798 = vld [vmem:[%s1 + $0x2c] sm:$0xf]
  %v799 = vld [vmem:[%s1 + $0x30] sm:$0xff]
  %v800 = vld [vmem:[%s1 + $0x38] sm:$0xf]
  %v801 = vld [vmem:[%s1 + $0x3c] sm:$0xff]
  %v802 = vld [vmem:[%s1 + $0x44] sm:$0xf]
  %v803 = vld [vmem:[%s1 + $0x48] sm:$0xff]
  %v804 = vld [vmem:[%s1 + $0x50] sm:$0xf]
  %v805 = vld [vmem:[%s1 + $0x54] sm:$0xff]
  %v806 = vld [vmem:[%s1 + $0x5c] sm:$0xf]
  %v807 = vld [vmem:[%s1 + $0x60] sm:$0xff]
  %v808 = vld [vmem:[%s1 + $0x68] sm:$0xf]
  %v809 = vld [vmem:[%s1 + $0x6c] sm:$0xff]
  %v810 = vld [vmem:[%s1 + $0x74] sm:$0xf]
  %v811 = vld [vmem:[%s1 + $0x78] sm:$0xff]
  %v812 = vld [vmem:[%s1 + $0x80] sm:$0xf]
  %v813 = vld [vmem:[%s1 + $0x84] sm:$0xff]
  %v814 = vld [vmem:[%s1 + $0x8c] sm:$0xf]
  %v815 = vld [vmem:[%s1 + $0x90] sm:$0xff]
  %v816 = vld [vmem:[%s1 + $0x98] sm:$0xf]
  %v817 = vld [vmem:[%s1 + $0x9c] sm:$0xff]
  %v818 = vld [vmem:[%s1 + $0xa4] sm:$0xf]
  %v819 = vld [vmem:[%s1 + $0xa8] sm:$0xff]
  %v820 = vld [vmem:[%s1 + $0xb0] sm:$0xf]
  %v821 = vld [vmem:[%s1 + $0xb4] sm:$0xff]
  %v822 = vld [vmem:[%s1 + $0xbc] sm:$0xf]
  %v855 = vunpack.c.l.b16 %v791
  %v856 = vunpack.c.h.b16 %v791
  %v857 = vunpack.c.l.b16 %v792
  %v858 = vunpack.c.l.b16 %v793
  %v859 = vunpack.c.h.b16 %v793
  %v860 = vunpack.c.l.b16 %v794
  %v861 = vunpack.c.l.b16 %v795
  %v862 = vunpack.c.h.b16 %v795
  %v863 = vunpack.c.l.b16 %v796
  %v864 = vunpack.c.l.b16 %v797
  %v865 = vunpack.c.h.b16 %v797
  %v866 = vunpack.c.l.b16 %v798
  %v867 = vunpack.c.l.b16 %v799
  %v868 = vunpack.c.h.b16 %v799
  %v869 = vunpack.c.l.b16 %v800
  %v870 = vunpack.c.l.b16 %v801
  %v871 = vunpack.c.h.b16 %v801
  %v872 = vunpack.c.l.b16 %v802
  %v873 = vunpack.c.l.b16 %v803
  %v874 = vunpack.c.h.b16 %v803
  %v875 = vunpack.c.l.b16 %v804
  %v876 = vunpack.c.l.b16 %v805
  %v877 = vunpack.c.h.b16 %v805
  %v878 = vunpack.c.l.b16 %v806
  %v879 = vunpack.c.l.b16 %v807
  %v880 = vunpack.c.h.b16 %v807
  %v881 = vunpack.c.l.b16 %v808
  %v882 = vunpack.c.l.b16 %v809
  %v883 = vunpack.c.h.b16 %v809
  %v884 = vunpack.c.l.b16 %v810
  %v885 = vunpack.c.l.b16 %v811
  %v886 = vunpack.c.h.b16 %v811
  %v887 = vunpack.c.l.b16 %v812
  %v888 = vunpack.c.l.b16 %v813
  %v889 = vunpack.c.h.b16 %v813
  %v890 = vunpack.c.l.b16 %v814
  %v891 = vunpack.c.l.b16 %v815
  %v892 = vunpack.c.h.b16 %v815
  %v893 = vunpack.c.l.b16 %v816
  %v894 = vunpack.c.l.b16 %v817
  %v895 = vunpack.c.h.b16 %v817
  %v896 = vunpack.c.l.b16 %v818
  %v897 = vunpack.c.l.b16 %v819
  %v898 = vunpack.c.h.b16 %v819
  %v899 = vunpack.c.l.b16 %v820
  %v900 = vunpack.c.l.b16 %v821
  %v901 = vunpack.c.h.b16 %v821
  %v902 = vunpack.c.l.b16 %v822
  %v903 = vpack.c.b16 %v858, %v855
  %v904 = vpack.c.b16 %v859, %v856
  %v905 = vpack.c.b16 %v860, %v857
  %v906 = vpack.c.b16 %v864, %v861
  %v907 = vpack.c.b16 %v865, %v862
  %v908 = vpack.c.b16 %v866, %v863
  %v909 = vpack.c.b16 %v870, %v867
  %v910 = vpack.c.b16 %v871, %v868
  %v911 = vpack.c.b16 %v872, %v869
  %v912 = vpack.c.b16 %v876, %v873
  %v913 = vpack.c.b16 %v877, %v874
  %v914 = vpack.c.b16 %v878, %v875
  %v915 = vpack.c.b16 %v882, %v879
  %v916 = vpack.c.b16 %v883, %v880
  %v917 = vpack.c.b16 %v884, %v881
  %v918 = vpack.c.b16 %v888, %v885
  %v919 = vpack.c.b16 %v889, %v886
  %v920 = vpack.c.b16 %v890, %v887
  %v921 = vpack.c.b16 %v894, %v891
  %v922 = vpack.c.b16 %v895, %v892
  %v923 = vpack.c.b16 %v896, %v893
  %v924 = vpack.c.b16 %v900, %v897
  %v925 = vpack.c.b16 %v901, %v898
  %v926 = vpack.c.b16 %v902, %v899
  %951 = vmatpush.bf16.msra.mxu0 %v924
  %952 = vmatpush.bf16.msra.mxu0 %v921
  %953 = vmatpush.bf16.msra.mxu0 %v918
  %954 = vmatpush.bf16.msra.mxu0 %v915
  %955 = vmatpush.bf16.msra.mxu0 %v912
  %956 = vmatpush.bf16.msra.mxu0 %v909
  %957 = vmatpush.bf16.msra.mxu0 %v906
  %958 = vmatpush.bf16.msra.mxu0 %v903
  %959 = vmatmul.bf16.gmra.mxu0 %v788
  %v960 = vpop.f32.mrf.mxu0
  %v961 = vadd.f32 0.0, %v960
  %v962 = vpop.f32.mrf.mxu0
  %963 = vdwg.mxu0
  %964 = vmatpush.bf16.msra.mxu0 %v925
  %965 = vmatpush.bf16.msra.mxu0 %v922
  %966 = vmatpush.bf16.msra.mxu0 %v919
  %967 = vmatpush.bf16.msra.mxu0 %v916
  %968 = vmatpush.bf16.msra.mxu0 %v913
  %969 = vmatpush.bf16.msra.mxu0 %v910
  %970 = vmatpush.bf16.msra.mxu0 %v907
  %971 = vmatpush.bf16.msra.mxu0 %v904
  %972 = vmatmul.bf16.gmra.mxu0 %v788
  %v973 = vpop.f32.mrf.mxu0
  %v974 = vadd.f32 0.0, %v973
  %v975 = vpop.f32.mrf.mxu0
  %976 = vdwg.mxu0
  %977 = vmatpush.bf16.msra.mxu0 %v926
  %978 = vmatpush.bf16.msra.mxu0 %v923
  %979 = vmatpush.bf16.msra.mxu0 %v920
  %980 = vmatpush.bf16.msra.mxu0 %v917
  %981 = vmatpush.bf16.msra.mxu0 %v914
  %982 = vmatpush.bf16.msra.mxu0 %v911
  %983 = vmatpush.bf16.msra.mxu0 %v908
  %984 = vmatpush.bf16.msra.mxu0 %v905
  %985 = vmatmul.bf16.gmra.mxu0 %v788
  %v986 = vpop.f32.mrf.mxu0
  %v987 = vadd.f32 0.0, %v986
  %v988 = vpop.f32.mrf.mxu0
  %989 = vdwg.mxu0
  %s990 = scalar_lea.vmem %s0, 36
  %v991 = vld [vmem:[%s990] sm:$0xf]
  %v992 = vunpack.c.l.bf16 %v991
  %v993 = vadd.f32 %v992, %v961
  %v994 = vxor.u32 %v993, 2147483648
  %v995 = vmul.f32 %v994, 1.442695
  %v996 = vpow.pop %v995
  %v997 = vadd.f32 %v996, 1.0
  %v998 = vrcp.pop %v997
  %v999 = vmul.f32 %v997, %v998
  %v1000 = vsub.f32 1.0, %v999
  %v1001 = vmul.f32 %v998, %v1000
  %v1002 = vadd.f32 %v998, %v1001
  %vm1003 = vweird.f32 %v997
  %vm1004 = vweird.f32 %v998
  %vm1005 = vmor %vm1003, %vm1004
  %v1006 = vsel %vm1005, %v998, %v1002
  %v1007 = vand.u32 2147483647, %v997
  %vm1008 = vcmp.eq.f32.partialorder %v1007, 8.507059e+37
  %v1009 = vand.u32 %v997, 2147483648
  %v1010 = vor.u32 1.1754944e-38, %v1009
  %v1011 = vsel %vm1008, %v1010, %v1006
  %v1012 = vmul.f32 1.0, %v1011
  %v1013 = vld [vmem:[%s990 + $0x4] sm:$0xf]
  %v1014 = vunpack.c.l.bf16 %v1013
  %v1015 = vadd.f32 %v1014, %v974
  %v1016 = vxor.u32 %v1015, 2147483648
  %v1017 = vmul.f32 %v1016, 1.442695
  %v1018 = vpow.pop %v1017
  %v1019 = vadd.f32 %v1018, 1.0
  %v1020 = vrcp.pop %v1019
  %v1021 = vmul.f32 %v1019, %v1020
  %v1022 = vsub.f32 1.0, %v1021
  %v1023 = vmul.f32 %v1020, %v1022
  %v1024 = vadd.f32 %v1020, %v1023
  %vm1025 = vweird.f32 %v1019
  %vm1026 = vweird.f32 %v1020
  %vm1027 = vmor %vm1025, %vm1026
  %v1028 = vsel %vm1027, %v1020, %v1024
  %v1029 = vand.u32 2147483647, %v1019
  %vm1030 = vcmp.eq.f32.partialorder %v1029, 8.507059e+37
  %v1031 = vand.u32 %v1019, 2147483648
  %v1032 = vor.u32 1.1754944e-38, %v1031
  %v1033 = vsel %vm1030, %v1032, %v1028
  %v1034 = vmul.f32 1.0, %v1033
  %v1035 = vld [vmem:[%s990 + $0x8] sm:$0xf]
  %v1036 = vadd.f32 %v987, %v21
  %v1037 = vmul.f32 %v1012, %v1036
  %v1038 = vunpack.c.l.bf16 %v1035
  %v1039 = vadd.f32 %v1038, %v1037
  %v1040 = vtanh.pop %v1039
  %v1041 = vsub.f32 %v787, %v1040
  %v1042 = vmul.f32 %v1034, %v1041
  %v1043 = vadd.f32 %v1040, %v1042
  %v1044 = vpack.c.bf16 %v1043, %v1043
  %s1045 = scalar_lea.vmem %s3, 12
  %1046 = vst [vmem:[%s1045] sm:$0xf] %v1044
  %v1047 = vld [vmem:[%s1] sm:$0xff]
  %v1048 = vld [vmem:[%s1 + $0x8] sm:$0xf]
  %v1049 = vld [vmem:[%s1 + $0xc] sm:$0xff]
  %v1050 = vld [vmem:[%s1 + $0x14] sm:$0xf]
  %v1051 = vld [vmem:[%s1 + $0x18] sm:$0xff]
  %v1052 = vld [vmem:[%s1 + $0x20] sm:$0xf]
  %v1053 = vld [vmem:[%s1 + $0x24] sm:$0xff]
  %v1054 = vld [vmem:[%s1 + $0x2c] sm:$0xf]
  %v1055 = vld [vmem:[%s1 + $0x30] sm:$0xff]
  %v1056 = vld [vmem:[%s1 + $0x38] sm:$0xf]
  %v1057 = vld [vmem:[%s1 + $0x3c] sm:$0xff]
  %v1058 = vld [vmem:[%s1 + $0x44] sm:$0xf]
  %v1059 = vld [vmem:[%s1 + $0x48] sm:$0xff]
  %v1060 = vld [vmem:[%s1 + $0x50] sm:$0xf]
  %v1061 = vld [vmem:[%s1 + $0x54] sm:$0xff]
  %v1062 = vld [vmem:[%s1 + $0x5c] sm:$0xf]
  %v1063 = vld [vmem:[%s1 + $0x60] sm:$0xff]
  %v1064 = vld [vmem:[%s1 + $0x68] sm:$0xf]
  %v1065 = vld [vmem:[%s1 + $0x6c] sm:$0xff]
  %v1066 = vld [vmem:[%s1 + $0x74] sm:$0xf]
  %v1067 = vld [vmem:[%s1 + $0x78] sm:$0xff]
  %v1068 = vld [vmem:[%s1 + $0x80] sm:$0xf]
  %v1069 = vld [vmem:[%s1 + $0x84] sm:$0xff]
  %v1070 = vld [vmem:[%s1 + $0x8c] sm:$0xf]
  %v1071 = vld [vmem:[%s1 + $0x90] sm:$0xff]
  %v1072 = vld [vmem:[%s1 + $0x98] sm:$0xf]
  %v1073 = vld [vmem:[%s1 + $0x9c] sm:$0xff]
  %v1074 = vld [vmem:[%s1 + $0xa4] sm:$0xf]
  %v1075 = vld [vmem:[%s1 + $0xa8] sm:$0xff]
  %v1076 = vld [vmem:[%s1 + $0xb0] sm:$0xf]
  %v1077 = vld [vmem:[%s1 + $0xb4] sm:$0xff]
  %v1078 = vld [vmem:[%s1 + $0xbc] sm:$0xf]
  %v1111 = vunpack.c.l.b16 %v1047
  %v1112 = vunpack.c.h.b16 %v1047
  %v1113 = vunpack.c.l.b16 %v1048
  %v1114 = vunpack.c.l.b16 %v1049
  %v1115 = vunpack.c.h.b16 %v1049
  %v1116 = vunpack.c.l.b16 %v1050
  %v1117 = vunpack.c.l.b16 %v1051
  %v1118 = vunpack.c.h.b16 %v1051
  %v1119 = vunpack.c.l.b16 %v1052
  %v1120 = vunpack.c.l.b16 %v1053
  %v1121 = vunpack.c.h.b16 %v1053
  %v1122 = vunpack.c.l.b16 %v1054
  %v1123 = vunpack.c.l.b16 %v1055
  %v1124 = vunpack.c.h.b16 %v1055
  %v1125 = vunpack.c.l.b16 %v1056
  %v1126 = vunpack.c.l.b16 %v1057
  %v1127 = vunpack.c.h.b16 %v1057
  %v1128 = vunpack.c.l.b16 %v1058
  %v1129 = vunpack.c.l.b16 %v1059
  %v1130 = vunpack.c.h.b16 %v1059
  %v1131 = vunpack.c.l.b16 %v1060
  %v1132 = vunpack.c.l.b16 %v1061
  %v1133 = vunpack.c.h.b16 %v1061
  %v1134 = vunpack.c.l.b16 %v1062
  %v1135 = vunpack.c.l.b16 %v1063
  %v1136 = vunpack.c.h.b16 %v1063
  %v1137 = vunpack.c.l.b16 %v1064
  %v1138 = vunpack.c.l.b16 %v1065
  %v1139 = vunpack.c.h.b16 %v1065
  %v1140 = vunpack.c.l.b16 %v1066
  %v1141 = vunpack.c.l.b16 %v1067
  %v1142 = vunpack.c.h.b16 %v1067
  %v1143 = vunpack.c.l.b16 %v1068
  %v1144 = vunpack.c.l.b16 %v1069
  %v1145 = vunpack.c.h.b16 %v1069
  %v1146 = vunpack.c.l.b16 %v1070
  %v1147 = vunpack.c.l.b16 %v1071
  %v1148 = vunpack.c.h.b16 %v1071
  %v1149 = vunpack.c.l.b16 %v1072
  %v1150 = vunpack.c.l.b16 %v1073
  %v1151 = vunpack.c.h.b16 %v1073
  %v1152 = vunpack.c.l.b16 %v1074
  %v1153 = vunpack.c.l.b16 %v1075
  %v1154 = vunpack.c.h.b16 %v1075
  %v1155 = vunpack.c.l.b16 %v1076
  %v1156 = vunpack.c.l.b16 %v1077
  %v1157 = vunpack.c.h.b16 %v1077
  %v1158 = vunpack.c.l.b16 %v1078
  %v1159 = vpack.c.b16 %v1114, %v1111
  %v1160 = vpack.c.b16 %v1115, %v1112
  %v1161 = vpack.c.b16 %v1116, %v1113
  %v1162 = vpack.c.b16 %v1120, %v1117
  %v1163 = vpack.c.b16 %v1121, %v1118
  %v1164 = vpack.c.b16 %v1122, %v1119
  %v1165 = vpack.c.b16 %v1126, %v1123
  %v1166 = vpack.c.b16 %v1127, %v1124
  %v1167 = vpack.c.b16 %v1128, %v1125
  %v1168 = vpack.c.b16 %v1132, %v1129
  %v1169 = vpack.c.b16 %v1133, %v1130
  %v1170 = vpack.c.b16 %v1134, %v1131
  %v1171 = vpack.c.b16 %v1138, %v1135
  %v1172 = vpack.c.b16 %v1139, %v1136
  %v1173 = vpack.c.b16 %v1140, %v1137
  %v1174 = vpack.c.b16 %v1144, %v1141
  %v1175 = vpack.c.b16 %v1145, %v1142
  %v1176 = vpack.c.b16 %v1146, %v1143
  %v1177 = vpack.c.b16 %v1150, %v1147
  %v1178 = vpack.c.b16 %v1151, %v1148
  %v1179 = vpack.c.b16 %v1152, %v1149
  %v1180 = vpack.c.b16 %v1156, %v1153
  %v1181 = vpack.c.b16 %v1157, %v1154
  %v1182 = vpack.c.b16 %v1158, %v1155
  %1207 = vmatpush.bf16.msra.mxu0 %v1180
  %1208 = vmatpush.bf16.msra.mxu0 %v1177
  %1209 = vmatpush.bf16.msra.mxu0 %v1174
  %1210 = vmatpush.bf16.msra.mxu0 %v1171
  %1211 = vmatpush.bf16.msra.mxu0 %v1168
  %1212 = vmatpush.bf16.msra.mxu0 %v1165
  %1213 = vmatpush.bf16.msra.mxu0 %v1162
  %1214 = vmatpush.bf16.msra.mxu0 %v1159
  %1215 = vmatmul.bf16.gmra.mxu0 %v1044
  %v1216 = vpop.f32.mrf.mxu0
  %v1217 = vadd.f32 0.0, %v1216
  %v1218 = vpop.f32.mrf.mxu0
  %1219 = vdwg.mxu0
  %1220 = vmatpush.bf16.msra.mxu0 %v1181
  %1221 = vmatpush.bf16.msra.mxu0 %v1178
  %1222 = vmatpush.bf16.msra.mxu0 %v1175
  %1223 = vmatpush.bf16.msra.mxu0 %v1172
  %1224 = vmatpush.bf16.msra.mxu0 %v1169
  %1225 = vmatpush.bf16.msra.mxu0 %v1166
  %1226 = vmatpush.bf16.msra.mxu0 %v1163
  %1227 = vmatpush.bf16.msra.mxu0 %v1160
  %1228 = vmatmul.bf16.gmra.mxu0 %v1044
  %v1229 = vpop.f32.mrf.mxu0
  %v1230 = vadd.f32 0.0, %v1229
  %v1231 = vpop.f32.mrf.mxu0
  %1232 = vdwg.mxu0
  %1233 = vmatpush.bf16.msra.mxu0 %v1182
  %1234 = vmatpush.bf16.msra.mxu0 %v1179
  %1235 = vmatpush.bf16.msra.mxu0 %v1176
  %1236 = vmatpush.bf16.msra.mxu0 %v1173
  %1237 = vmatpush.bf16.msra.mxu0 %v1170
  %1238 = vmatpush.bf16.msra.mxu0 %v1167
  %1239 = vmatpush.bf16.msra.mxu0 %v1164
  %1240 = vmatpush.bf16.msra.mxu0 %v1161
  %1241 = vmatmul.bf16.gmra.mxu0 %v1044
  %v1242 = vpop.f32.mrf.mxu0
  %v1243 = vadd.f32 0.0, %v1242
  %v1244 = vpop.f32.mrf.mxu0
  %1245 = vdwg.mxu0
  %s1246 = scalar_lea.vmem %s0, 48
  %v1247 = vld [vmem:[%s1246] sm:$0xf]
  %v1248 = vunpack.c.l.bf16 %v1247
  %v1249 = vadd.f32 %v1248, %v1217
  %v1250 = vxor.u32 %v1249, 2147483648
  %v1251 = vmul.f32 %v1250, 1.442695
  %v1252 = vpow.pop %v1251
  %v1253 = vadd.f32 %v1252, 1.0
  %v1254 = vrcp.pop %v1253
  %v1255 = vmul.f32 %v1253, %v1254
  %v1256 = vsub.f32 1.0, %v1255
  %v1257 = vmul.f32 %v1254, %v1256
  %v1258 = vadd.f32 %v1254, %v1257
  %vm1259 = vweird.f32 %v1253
  %vm1260 = vweird.f32 %v1254
  %vm1261 = vmor %vm1259, %vm1260
  %v1262 = vsel %vm1261, %v1254, %v1258
  %v1263 = vand.u32 2147483647, %v1253
  %vm1264 = vcmp.eq.f32.partialorder %v1263, 8.507059e+37
  %v1265 = vand.u32 %v1253, 2147483648
  %v1266 = vor.u32 1.1754944e-38, %v1265
  %v1267 = vsel %vm1264, %v1266, %v1262
  %v1268 = vmul.f32 1.0, %v1267
  %v1269 = vld [vmem:[%s1246 + $0x4] sm:$0xf]
  %v1270 = vunpack.c.l.bf16 %v1269
  %v1271 = vadd.f32 %v1270, %v1230
  %v1272 = vxor.u32 %v1271, 2147483648
  %v1273 = vmul.f32 %v1272, 1.442695
  %v1274 = vpow.pop %v1273
  %v1275 = vadd.f32 %v1274, 1.0
  %v1276 = vrcp.pop %v1275
  %v1277 = vmul.f32 %v1275, %v1276
  %v1278 = vsub.f32 1.0, %v1277
  %v1279 = vmul.f32 %v1276, %v1278
  %v1280 = vadd.f32 %v1276, %v1279
  %vm1281 = vweird.f32 %v1275
  %vm1282 = vweird.f32 %v1276
  %vm1283 = vmor %vm1281, %vm1282
  %v1284 = vsel %vm1283, %v1276, %v1280
  %v1285 = vand.u32 2147483647, %v1275
  %vm1286 = vcmp.eq.f32.partialorder %v1285, 8.507059e+37
  %v1287 = vand.u32 %v1275, 2147483648
  %v1288 = vor.u32 1.1754944e-38, %v1287
  %v1289 = vsel %vm1286, %v1288, %v1284
  %v1290 = vmul.f32 1.0, %v1289
  %v1291 = vld [vmem:[%s1246 + $0x8] sm:$0xf]
  %v1292 = vadd.f32 %v1243, %v21
  %v1293 = vmul.f32 %v1268, %v1292
  %v1294 = vunpack.c.l.bf16 %v1291
  %v1295 = vadd.f32 %v1294, %v1293
  %v1296 = vtanh.pop %v1295
  %v1297 = vsub.f32 %v1043, %v1296
  %v1298 = vmul.f32 %v1290, %v1297
  %v1299 = vadd.f32 %v1296, %v1298
  %v1300 = vpack.c.bf16 %v1299, %v1299
  %s1301 = scalar_lea.vmem %s3, 16
  %1302 = vst [vmem:[%s1301] sm:$0xf] %v1300
  %v1303 = vld [vmem:[%s1] sm:$0xff]
  %v1304 = vld [vmem:[%s1 + $0x8] sm:$0xf]
  %v1305 = vld [vmem:[%s1 + $0xc] sm:$0xff]
  %v1306 = vld [vmem:[%s1 + $0x14] sm:$0xf]
  %v1307 = vld [vmem:[%s1 + $0x18] sm:$0xff]
  %v1308 = vld [vmem:[%s1 + $0x20] sm:$0xf]
  %v1309 = vld [vmem:[%s1 + $0x24] sm:$0xff]
  %v1310 = vld [vmem:[%s1 + $0x2c] sm:$0xf]
  %v1311 = vld [vmem:[%s1 + $0x30] sm:$0xff]
  %v1312 = vld [vmem:[%s1 + $0x38] sm:$0xf]
  %v1313 = vld [vmem:[%s1 + $0x3c] sm:$0xff]
  %v1314 = vld [vmem:[%s1 + $0x44] sm:$0xf]
  %v1315 = vld [vmem:[%s1 + $0x48] sm:$0xff]
  %v1316 = vld [vmem:[%s1 + $0x50] sm:$0xf]
  %v1317 = vld [vmem:[%s1 + $0x54] sm:$0xff]
  %v1318 = vld [vmem:[%s1 + $0x5c] sm:$0xf]
  %v1319 = vld [vmem:[%s1 + $0x60] sm:$0xff]
  %v1320 = vld [vmem:[%s1 + $0x68] sm:$0xf]
  %v1321 = vld [vmem:[%s1 + $0x6c] sm:$0xff]
  %v1322 = vld [vmem:[%s1 + $0x74] sm:$0xf]
  %v1323 = vld [vmem:[%s1 + $0x78] sm:$0xff]
  %v1324 = vld [vmem:[%s1 + $0x80] sm:$0xf]
  %v1325 = vld [vmem:[%s1 + $0x84] sm:$0xff]
  %v1326 = vld [vmem:[%s1 + $0x8c] sm:$0xf]
  %v1327 = vld [vmem:[%s1 + $0x90] sm:$0xff]
  %v1328 = vld [vmem:[%s1 + $0x98] sm:$0xf]
  %v1329 = vld [vmem:[%s1 + $0x9c] sm:$0xff]
  %v1330 = vld [vmem:[%s1 + $0xa4] sm:$0xf]
  %v1331 = vld [vmem:[%s1 + $0xa8] sm:$0xff]
  %v1332 = vld [vmem:[%s1 + $0xb0] sm:$0xf]
  %v1333 = vld [vmem:[%s1 + $0xb4] sm:$0xff]
  %v1334 = vld [vmem:[%s1 + $0xbc] sm:$0xf]
  %v1367 = vunpack.c.l.b16 %v1303
  %v1368 = vunpack.c.h.b16 %v1303
  %v1369 = vunpack.c.l.b16 %v1304
  %v1370 = vunpack.c.l.b16 %v1305
  %v1371 = vunpack.c.h.b16 %v1305
  %v1372 = vunpack.c.l.b16 %v1306
  %v1373 = vunpack.c.l.b16 %v1307
  %v1374 = vunpack.c.h.b16 %v1307
  %v1375 = vunpack.c.l.b16 %v1308
  %v1376 = vunpack.c.l.b16 %v1309
  %v1377 = vunpack.c.h.b16 %v1309
  %v1378 = vunpack.c.l.b16 %v1310
  %v1379 = vunpack.c.l.b16 %v1311
  %v1380 = vunpack.c.h.b16 %v1311
  %v1381 = vunpack.c.l.b16 %v1312
  %v1382 = vunpack.c.l.b16 %v1313
  %v1383 = vunpack.c.h.b16 %v1313
  %v1384 = vunpack.c.l.b16 %v1314
  %v1385 = vunpack.c.l.b16 %v1315
  %v1386 = vunpack.c.h.b16 %v1315
  %v1387 = vunpack.c.l.b16 %v1316
  %v1388 = vunpack.c.l.b16 %v1317
  %v1389 = vunpack.c.h.b16 %v1317
  %v1390 = vunpack.c.l.b16 %v1318
  %v1391 = vunpack.c.l.b16 %v1319
  %v1392 = vunpack.c.h.b16 %v1319
  %v1393 = vunpack.c.l.b16 %v1320
  %v1394 = vunpack.c.l.b16 %v1321
  %v1395 = vunpack.c.h.b16 %v1321
  %v1396 = vunpack.c.l.b16 %v1322
  %v1397 = vunpack.c.l.b16 %v1323
  %v1398 = vunpack.c.h.b16 %v1323
  %v1399 = vunpack.c.l.b16 %v1324
  %v1400 = vunpack.c.l.b16 %v1325
  %v1401 = vunpack.c.h.b16 %v1325
  %v1402 = vunpack.c.l.b16 %v1326
  %v1403 = vunpack.c.l.b16 %v1327
  %v1404 = vunpack.c.h.b16 %v1327
  %v1405 = vunpack.c.l.b16 %v1328
  %v1406 = vunpack.c.l.b16 %v1329
  %v1407 = vunpack.c.h.b16 %v1329
  %v1408 = vunpack.c.l.b16 %v1330
  %v1409 = vunpack.c.l.b16 %v1331
  %v1410 = vunpack.c.h.b16 %v1331
  %v1411 = vunpack.c.l.b16 %v1332
  %v1412 = vunpack.c.l.b16 %v1333
  %v1413 = vunpack.c.h.b16 %v1333
  %v1414 = vunpack.c.l.b16 %v1334
  %v1415 = vpack.c.b16 %v1370, %v1367
  %v1416 = vpack.c.b16 %v1371, %v1368
  %v1417 = vpack.c.b16 %v1372, %v1369
  %v1418 = vpack.c.b16 %v1376, %v1373
  %v1419 = vpack.c.b16 %v1377, %v1374
  %v1420 = vpack.c.b16 %v1378, %v1375
  %v1421 = vpack.c.b16 %v1382, %v1379
  %v1422 = vpack.c.b16 %v1383, %v1380
  %v1423 = vpack.c.b16 %v1384, %v1381
  %v1424 = vpack.c.b16 %v1388, %v1385
  %v1425 = vpack.c.b16 %v1389, %v1386
  %v1426 = vpack.c.b16 %v1390, %v1387
  %v1427 = vpack.c.b16 %v1394, %v1391
  %v1428 = vpack.c.b16 %v1395, %v1392
  %v1429 = vpack.c.b16 %v1396, %v1393
  %v1430 = vpack.c.b16 %v1400, %v1397
  %v1431 = vpack.c.b16 %v1401, %v1398
  %v1432 = vpack.c.b16 %v1402, %v1399
  %v1433 = vpack.c.b16 %v1406, %v1403
  %v1434 = vpack.c.b16 %v1407, %v1404
  %v1435 = vpack.c.b16 %v1408, %v1405
  %v1436 = vpack.c.b16 %v1412, %v1409
  %v1437 = vpack.c.b16 %v1413, %v1410
  %v1438 = vpack.c.b16 %v1414, %v1411
  %1463 = vmatpush.bf16.msra.mxu0 %v1436
  %1464 = vmatpush.bf16.msra.mxu0 %v1433
  %1465 = vmatpush.bf16.msra.mxu0 %v1430
  %1466 = vmatpush.bf16.msra.mxu0 %v1427
  %1467 = vmatpush.bf16.msra.mxu0 %v1424
  %1468 = vmatpush.bf16.msra.mxu0 %v1421
  %1469 = vmatpush.bf16.msra.mxu0 %v1418
  %1470 = vmatpush.bf16.msra.mxu0 %v1415
  %1471 = vmatmul.bf16.gmra.mxu0 %v1300
  %v1472 = vpop.f32.mrf.mxu0
  %v1473 = vadd.f32 0.0, %v1472
  %v1474 = vpop.f32.mrf.mxu0
  %1475 = vdwg.mxu0
  %1476 = vmatpush.bf16.msra.mxu0 %v1437
  %1477 = vmatpush.bf16.msra.mxu0 %v1434
  %1478 = vmatpush.bf16.msra.mxu0 %v1431
  %1479 = vmatpush.bf16.msra.mxu0 %v1428
  %1480 = vmatpush.bf16.msra.mxu0 %v1425
  %1481 = vmatpush.bf16.msra.mxu0 %v1422
  %1482 = vmatpush.bf16.msra.mxu0 %v1419
  %1483 = vmatpush.bf16.msra.mxu0 %v1416
  %1484 = vmatmul.bf16.gmra.mxu0 %v1300
  %v1485 = vpop.f32.mrf.mxu0
  %v1486 = vadd.f32 0.0, %v1485
  %v1487 = vpop.f32.mrf.mxu0
  %1488 = vdwg.mxu0
  %1489 = vmatpush.bf16.msra.mxu0 %v1438
  %1490 = vmatpush.bf16.msra.mxu0 %v1435
  %1491 = vmatpush.bf16.msra.mxu0 %v1432
  %1492 = vmatpush.bf16.msra.mxu0 %v1429
  %1493 = vmatpush.bf16.msra.mxu0 %v1426
  %1494 = vmatpush.bf16.msra.mxu0 %v1423
  %1495 = vmatpush.bf16.msra.mxu0 %v1420
  %1496 = vmatpush.bf16.msra.mxu0 %v1417
  %1497 = vmatmul.bf16.gmra.mxu0 %v1300
  %v1498 = vpop.f32.mrf.mxu0
  %v1499 = vadd.f32 0.0, %v1498
  %v1500 = vpop.f32.mrf.mxu0
  %1501 = vdwg.mxu0
  %s1502 = scalar_lea.vmem %s0, 60
  %v1503 = vld [vmem:[%s1502] sm:$0xf]
  %v1504 = vunpack.c.l.bf16 %v1503
  %v1505 = vadd.f32 %v1504, %v1473
  %v1506 = vxor.u32 %v1505, 2147483648
  %v1507 = vmul.f32 %v1506, 1.442695
  %v1508 = vpow.pop %v1507
  %v1509 = vadd.f32 %v1508, 1.0
  %v1510 = vrcp.pop %v1509
  %v1511 = vmul.f32 %v1509, %v1510
  %v1512 = vsub.f32 1.0, %v1511
  %v1513 = vmul.f32 %v1510, %v1512
  %v1514 = vadd.f32 %v1510, %v1513
  %vm1515 = vweird.f32 %v1509
  %vm1516 = vweird.f32 %v1510
  %vm1517 = vmor %vm1515, %vm1516
  %v1518 = vsel %vm1517, %v1510, %v1514
  %v1519 = vand.u32 2147483647, %v1509
  %vm1520 = vcmp.eq.f32.partialorder %v1519, 8.507059e+37
  %v1521 = vand.u32 %v1509, 2147483648
  %v1522 = vor.u32 1.1754944e-38, %v1521
  %v1523 = vsel %vm1520, %v1522, %v1518
  %v1524 = vmul.f32 1.0, %v1523
  %v1525 = vld [vmem:[%s1502 + $0x4] sm:$0xf]
  %v1526 = vunpack.c.l.bf16 %v1525
  %v1527 = vadd.f32 %v1526, %v1486
  %v1528 = vxor.u32 %v1527, 2147483648
  %v1529 = vmul.f32 %v1528, 1.442695
  %v1530 = vpow.pop %v1529
  %v1531 = vadd.f32 %v1530, 1.0
  %v1532 = vrcp.pop %v1531
  %v1533 = vmul.f32 %v1531, %v1532
  %v1534 = vsub.f32 1.0, %v1533
  %v1535 = vmul.f32 %v1532, %v1534
  %v1536 = vadd.f32 %v1532, %v1535
  %vm1537 = vweird.f32 %v1531
  %vm1538 = vweird.f32 %v1532
  %vm1539 = vmor %vm1537, %vm1538
  %v1540 = vsel %vm1539, %v1532, %v1536
  %v1541 = vand.u32 2147483647, %v1531
  %vm1542 = vcmp.eq.f32.partialorder %v1541, 8.507059e+37
  %v1543 = vand.u32 %v1531, 2147483648
  %v1544 = vor.u32 1.1754944e-38, %v1543
  %v1545 = vsel %vm1542, %v1544, %v1540
  %v1546 = vmul.f32 1.0, %v1545
  %v1547 = vld [vmem:[%s1502 + $0x8] sm:$0xf]
  %v1548 = vadd.f32 %v1499, %v21
  %v1549 = vmul.f32 %v1524, %v1548
  %v1550 = vunpack.c.l.bf16 %v1547
  %v1551 = vadd.f32 %v1550, %v1549
  %v1552 = vtanh.pop %v1551
  %v1553 = vsub.f32 %v1299, %v1552
  %v1554 = vmul.f32 %v1546, %v1553
  %v1555 = vadd.f32 %v1552, %v1554
  %v1556 = vpack.c.bf16 %v1555, %v1555
  %s1557 = scalar_lea.vmem %s3, 20
  %1558 = vst [vmem:[%s1557] sm:$0xf] %v1556
  %v1559 = vld [vmem:[%s1] sm:$0xff]
  %v1560 = vld [vmem:[%s1 + $0x8] sm:$0xf]
  %v1561 = vld [vmem:[%s1 + $0xc] sm:$0xff]
  %v1562 = vld [vmem:[%s1 + $0x14] sm:$0xf]
  %v1563 = vld [vmem:[%s1 + $0x18] sm:$0xff]
  %v1564 = vld [vmem:[%s1 + $0x20] sm:$0xf]
  %v1565 = vld [vmem:[%s1 + $0x24] sm:$0xff]
  %v1566 = vld [vmem:[%s1 + $0x2c] sm:$0xf]
  %v1567 = vld [vmem:[%s1 + $0x30] sm:$0xff]
  %v1568 = vld [vmem:[%s1 + $0x38] sm:$0xf]
  %v1569 = vld [vmem:[%s1 + $0x3c] sm:$0xff]
  %v1570 = vld [vmem:[%s1 + $0x44] sm:$0xf]
  %v1571 = vld [vmem:[%s1 + $0x48] sm:$0xff]
  %v1572 = vld [vmem:[%s1 + $0x50] sm:$0xf]
  %v1573 = vld [vmem:[%s1 + $0x54] sm:$0xff]
  %v1574 = vld [vmem:[%s1 + $0x5c] sm:$0xf]
  %v1575 = vld [vmem:[%s1 + $0x60] sm:$0xff]
  %v1576 = vld [vmem:[%s1 + $0x68] sm:$0xf]
  %v1577 = vld [vmem:[%s1 + $0x6c] sm:$0xff]
  %v1578 = vld [vmem:[%s1 + $0x74] sm:$0xf]
  %v1579 = vld [vmem:[%s1 + $0x78] sm:$0xff]
  %v1580 = vld [vmem:[%s1 + $0x80] sm:$0xf]
  %v1581 = vld [vmem:[%s1 + $0x84] sm:$0xff]
  %v1582 = vld [vmem:[%s1 + $0x8c] sm:$0xf]
  %v1583 = vld [vmem:[%s1 + $0x90] sm:$0xff]
  %v1584 = vld [vmem:[%s1 + $0x98] sm:$0xf]
  %v1585 = vld [vmem:[%s1 + $0x9c] sm:$0xff]
  %v1586 = vld [vmem:[%s1 + $0xa4] sm:$0xf]
  %v1587 = vld [vmem:[%s1 + $0xa8] sm:$0xff]
  %v1588 = vld [vmem:[%s1 + $0xb0] sm:$0xf]
  %v1589 = vld [vmem:[%s1 + $0xb4] sm:$0xff]
  %v1590 = vld [vmem:[%s1 + $0xbc] sm:$0xf]
  %v1623 = vunpack.c.l.b16 %v1559
  %v1624 = vunpack.c.h.b16 %v1559
  %v1625 = vunpack.c.l.b16 %v1560
  %v1626 = vunpack.c.l.b16 %v1561
  %v1627 = vunpack.c.h.b16 %v1561
  %v1628 = vunpack.c.l.b16 %v1562
  %v1629 = vunpack.c.l.b16 %v1563
  %v1630 = vunpack.c.h.b16 %v1563
  %v1631 = vunpack.c.l.b16 %v1564
  %v1632 = vunpack.c.l.b16 %v1565
  %v1633 = vunpack.c.h.b16 %v1565
  %v1634 = vunpack.c.l.b16 %v1566
  %v1635 = vunpack.c.l.b16 %v1567
  %v1636 = vunpack.c.h.b16 %v1567
  %v1637 = vunpack.c.l.b16 %v1568
  %v1638 = vunpack.c.l.b16 %v1569
  %v1639 = vunpack.c.h.b16 %v1569
  %v1640 = vunpack.c.l.b16 %v1570
  %v1641 = vunpack.c.l.b16 %v1571
  %v1642 = vunpack.c.h.b16 %v1571
  %v1643 = vunpack.c.l.b16 %v1572
  %v1644 = vunpack.c.l.b16 %v1573
  %v1645 = vunpack.c.h.b16 %v1573
  %v1646 = vunpack.c.l.b16 %v1574
  %v1647 = vunpack.c.l.b16 %v1575
  %v1648 = vunpack.c.h.b16 %v1575
  %v1649 = vunpack.c.l.b16 %v1576
  %v1650 = vunpack.c.l.b16 %v1577
  %v1651 = vunpack.c.h.b16 %v1577
  %v1652 = vunpack.c.l.b16 %v1578
  %v1653 = vunpack.c.l.b16 %v1579
  %v1654 = vunpack.c.h.b16 %v1579
  %v1655 = vunpack.c.l.b16 %v1580
  %v1656 = vunpack.c.l.b16 %v1581
  %v1657 = vunpack.c.h.b16 %v1581
  %v1658 = vunpack.c.l.b16 %v1582
  %v1659 = vunpack.c.l.b16 %v1583
  %v1660 = vunpack.c.h.b16 %v1583
  %v1661 = vunpack.c.l.b16 %v1584
  %v1662 = vunpack.c.l.b16 %v1585
  %v1663 = vunpack.c.h.b16 %v1585
  %v1664 = vunpack.c.l.b16 %v1586
  %v1665 = vunpack.c.l.b16 %v1587
  %v1666 = vunpack.c.h.b16 %v1587
  %v1667 = vunpack.c.l.b16 %v1588
  %v1668 = vunpack.c.l.b16 %v1589
  %v1669 = vunpack.c.h.b16 %v1589
  %v1670 = vunpack.c.l.b16 %v1590
  %v1671 = vpack.c.b16 %v1626, %v1623
  %v1672 = vpack.c.b16 %v1627, %v1624
  %v1673 = vpack.c.b16 %v1628, %v1625
  %v1674 = vpack.c.b16 %v1632, %v1629
  %v1675 = vpack.c.b16 %v1633, %v1630
  %v1676 = vpack.c.b16 %v1634, %v1631
  %v1677 = vpack.c.b16 %v1638, %v1635
  %v1678 = vpack.c.b16 %v1639, %v1636
  %v1679 = vpack.c.b16 %v1640, %v1637
  %v1680 = vpack.c.b16 %v1644, %v1641
  %v1681 = vpack.c.b16 %v1645, %v1642
  %v1682 = vpack.c.b16 %v1646, %v1643
  %v1683 = vpack.c.b16 %v1650, %v1647
  %v1684 = vpack.c.b16 %v1651, %v1648
  %v1685 = vpack.c.b16 %v1652, %v1649
  %v1686 = vpack.c.b16 %v1656, %v1653
  %v1687 = vpack.c.b16 %v1657, %v1654
  %v1688 = vpack.c.b16 %v1658, %v1655
  %v1689 = vpack.c.b16 %v1662, %v1659
  %v1690 = vpack.c.b16 %v1663, %v1660
  %v1691 = vpack.c.b16 %v1664, %v1661
  %v1692 = vpack.c.b16 %v1668, %v1665
  %v1693 = vpack.c.b16 %v1669, %v1666
  %v1694 = vpack.c.b16 %v1670, %v1667
  %1719 = vmatpush.bf16.msra.mxu0 %v1692
  %1720 = vmatpush.bf16.msra.mxu0 %v1689
  %1721 = vmatpush.bf16.msra.mxu0 %v1686
  %1722 = vmatpush.bf16.msra.mxu0 %v1683
  %1723 = vmatpush.bf16.msra.mxu0 %v1680
  %1724 = vmatpush.bf16.msra.mxu0 %v1677
  %1725 = vmatpush.bf16.msra.mxu0 %v1674
  %1726 = vmatpush.bf16.msra.mxu0 %v1671
  %1727 = vmatmul.bf16.gmra.mxu0 %v1556
  %v1728 = vpop.f32.mrf.mxu0
  %v1729 = vadd.f32 0.0, %v1728
  %v1730 = vpop.f32.mrf.mxu0
  %1731 = vdwg.mxu0
  %1732 = vmatpush.bf16.msra.mxu0 %v1693
  %1733 = vmatpush.bf16.msra.mxu0 %v1690
  %1734 = vmatpush.bf16.msra.mxu0 %v1687
  %1735 = vmatpush.bf16.msra.mxu0 %v1684
  %1736 = vmatpush.bf16.msra.mxu0 %v1681
  %1737 = vmatpush.bf16.msra.mxu0 %v1678
  %1738 = vmatpush.bf16.msra.mxu0 %v1675
  %1739 = vmatpush.bf16.msra.mxu0 %v1672
  %1740 = vmatmul.bf16.gmra.mxu0 %v1556
  %v1741 = vpop.f32.mrf.mxu0
  %v1742 = vadd.f32 0.0, %v1741
  %v1743 = vpop.f32.mrf.mxu0
  %1744 = vdwg.mxu0
  %1745 = vmatpush.bf16.msra.mxu0 %v1694
  %1746 = vmatpush.bf16.msra.mxu0 %v1691
  %1747 = vmatpush.bf16.msra.mxu0 %v1688
  %1748 = vmatpush.bf16.msra.mxu0 %v1685
  %1749 = vmatpush.bf16.msra.mxu0 %v1682
  %1750 = vmatpush.bf16.msra.mxu0 %v1679
  %1751 = vmatpush.bf16.msra.mxu0 %v1676
  %1752 = vmatpush.bf16.msra.mxu0 %v1673
  %1753 = vmatmul.bf16.gmra.mxu0 %v1556
  %v1754 = vpop.f32.mrf.mxu0
  %v1755 = vadd.f32 0.0, %v1754
  %v1756 = vpop.f32.mrf.mxu0
  %1757 = vdwg.mxu0
  %s1758 = scalar_lea.vmem %s0, 72
  %v1759 = vld [vmem:[%s1758] sm:$0xf]
  %v1760 = vunpack.c.l.bf16 %v1759
  %v1761 = vadd.f32 %v1760, %v1729
  %v1762 = vxor.u32 %v1761, 2147483648
  %v1763 = vmul.f32 %v1762, 1.442695
  %v1764 = vpow.pop %v1763
  %v1765 = vadd.f32 %v1764, 1.0
  %v1766 = vrcp.pop %v1765
  %v1767 = vmul.f32 %v1765, %v1766
  %v1768 = vsub.f32 1.0, %v1767
  %v1769 = vmul.f32 %v1766, %v1768
  %v1770 = vadd.f32 %v1766, %v1769
  %vm1771 = vweird.f32 %v1765
  %vm1772 = vweird.f32 %v1766
  %vm1773 = vmor %vm1771, %vm1772
  %v1774 = vsel %vm1773, %v1766, %v1770
  %v1775 = vand.u32 2147483647, %v1765
  %vm1776 = vcmp.eq.f32.partialorder %v1775, 8.507059e+37
  %v1777 = vand.u32 %v1765, 2147483648
  %v1778 = vor.u32 1.1754944e-38, %v1777
  %v1779 = vsel %vm1776, %v1778, %v1774
  %v1780 = vmul.f32 1.0, %v1779
  %v1781 = vld [vmem:[%s1758 + $0x4] sm:$0xf]
  %v1782 = vunpack.c.l.bf16 %v1781
  %v1783 = vadd.f32 %v1782, %v1742
  %v1784 = vxor.u32 %v1783, 2147483648
  %v1785 = vmul.f32 %v1784, 1.442695
  %v1786 = vpow.pop %v1785
  %v1787 = vadd.f32 %v1786, 1.0
  %v1788 = vrcp.pop %v1787
  %v1789 = vmul.f32 %v1787, %v1788
  %v1790 = vsub.f32 1.0, %v1789
  %v1791 = vmul.f32 %v1788, %v1790
  %v1792 = vadd.f32 %v1788, %v1791
  %vm1793 = vweird.f32 %v1787
  %vm1794 = vweird.f32 %v1788
  %vm1795 = vmor %vm1793, %vm1794
  %v1796 = vsel %vm1795, %v1788, %v1792
  %v1797 = vand.u32 2147483647, %v1787
  %vm1798 = vcmp.eq.f32.partialorder %v1797, 8.507059e+37
  %v1799 = vand.u32 %v1787, 2147483648
  %v1800 = vor.u32 1.1754944e-38, %v1799
  %v1801 = vsel %vm1798, %v1800, %v1796
  %v1802 = vmul.f32 1.0, %v1801
  %v1803 = vld [vmem:[%s1758 + $0x8] sm:$0xf]
  %v1804 = vadd.f32 %v1755, %v21
  %v1805 = vmul.f32 %v1780, %v1804
  %v1806 = vunpack.c.l.bf16 %v1803
  %v1807 = vadd.f32 %v1806, %v1805
  %v1808 = vtanh.pop %v1807
  %v1809 = vsub.f32 %v1555, %v1808
  %v1810 = vmul.f32 %v1802, %v1809
  %v1811 = vadd.f32 %v1808, %v1810
  %v1812 = vpack.c.bf16 %v1811, %v1811
  %s1813 = scalar_lea.vmem %s3, 24
  %1814 = vst [vmem:[%s1813] sm:$0xf] %v1812
  %v1815 = vld [vmem:[%s1] sm:$0xff]
  %v1816 = vld [vmem:[%s1 + $0x8] sm:$0xf]
  %v1817 = vld [vmem:[%s1 + $0xc] sm:$0xff]
  %v1818 = vld [vmem:[%s1 + $0x14] sm:$0xf]
  %v1819 = vld [vmem:[%s1 + $0x18] sm:$0xff]
  %v1820 = vld [vmem:[%s1 + $0x20] sm:$0xf]
  %v1821 = vld [vmem:[%s1 + $0x24] sm:$0xff]
  %v1822 = vld [vmem:[%s1 + $0x2c] sm:$0xf]
  %v1823 = vld [vmem:[%s1 + $0x30] sm:$0xff]
  %v1824 = vld [vmem:[%s1 + $0x38] sm:$0xf]
  %v1825 = vld [vmem:[%s1 + $0x3c] sm:$0xff]
  %v1826 = vld [vmem:[%s1 + $0x44] sm:$0xf]
  %v1827 = vld [vmem:[%s1 + $0x48] sm:$0xff]
  %v1828 = vld [vmem:[%s1 + $0x50] sm:$0xf]
  %v1829 = vld [vmem:[%s1 + $0x54] sm:$0xff]
  %v1830 = vld [vmem:[%s1 + $0x5c] sm:$0xf]
  %v1831 = vld [vmem:[%s1 + $0x60] sm:$0xff]
  %v1832 = vld [vmem:[%s1 + $0x68] sm:$0xf]
  %v1833 = vld [vmem:[%s1 + $0x6c] sm:$0xff]
  %v1834 = vld [vmem:[%s1 + $0x74] sm:$0xf]
  %v1835 = vld [vmem:[%s1 + $0x78] sm:$0xff]
  %v1836 = vld [vmem:[%s1 + $0x80] sm:$0xf]
  %v1837 = vld [vmem:[%s1 + $0x84] sm:$0xff]
  %v1838 = vld [vmem:[%s1 + $0x8c] sm:$0xf]
  %v1839 = vld [vmem:[%s1 + $0x90] sm:$0xff]
  %v1840 = vld [vmem:[%s1 + $0x98] sm:$0xf]
  %v1841 = vld [vmem:[%s1 + $0x9c] sm:$0xff]
  %v1842 = vld [vmem:[%s1 + $0xa4] sm:$0xf]
  %v1843 = vld [vmem:[%s1 + $0xa8] sm:$0xff]
  %v1844 = vld [vmem:[%s1 + $0xb0] sm:$0xf]
  %v1845 = vld [vmem:[%s1 + $0xb4] sm:$0xff]
  %v1846 = vld [vmem:[%s1 + $0xbc] sm:$0xf]
  %v1879 = vunpack.c.l.b16 %v1815
  %v1880 = vunpack.c.h.b16 %v1815
  %v1881 = vunpack.c.l.b16 %v1816
  %v1882 = vunpack.c.l.b16 %v1817
  %v1883 = vunpack.c.h.b16 %v1817
  %v1884 = vunpack.c.l.b16 %v1818
  %v1885 = vunpack.c.l.b16 %v1819
  %v1886 = vunpack.c.h.b16 %v1819
  %v1887 = vunpack.c.l.b16 %v1820
  %v1888 = vunpack.c.l.b16 %v1821
  %v1889 = vunpack.c.h.b16 %v1821
  %v1890 = vunpack.c.l.b16 %v1822
  %v1891 = vunpack.c.l.b16 %v1823
  %v1892 = vunpack.c.h.b16 %v1823
  %v1893 = vunpack.c.l.b16 %v1824
  %v1894 = vunpack.c.l.b16 %v1825
  %v1895 = vunpack.c.h.b16 %v1825
  %v1896 = vunpack.c.l.b16 %v1826
  %v1897 = vunpack.c.l.b16 %v1827
  %v1898 = vunpack.c.h.b16 %v1827
  %v1899 = vunpack.c.l.b16 %v1828
  %v1900 = vunpack.c.l.b16 %v1829
  %v1901 = vunpack.c.h.b16 %v1829
  %v1902 = vunpack.c.l.b16 %v1830
  %v1903 = vunpack.c.l.b16 %v1831
  %v1904 = vunpack.c.h.b16 %v1831
  %v1905 = vunpack.c.l.b16 %v1832
  %v1906 = vunpack.c.l.b16 %v1833
  %v1907 = vunpack.c.h.b16 %v1833
  %v1908 = vunpack.c.l.b16 %v1834
  %v1909 = vunpack.c.l.b16 %v1835
  %v1910 = vunpack.c.h.b16 %v1835
  %v1911 = vunpack.c.l.b16 %v1836
  %v1912 = vunpack.c.l.b16 %v1837
  %v1913 = vunpack.c.h.b16 %v1837
  %v1914 = vunpack.c.l.b16 %v1838
  %v1915 = vunpack.c.l.b16 %v1839
  %v1916 = vunpack.c.h.b16 %v1839
  %v1917 = vunpack.c.l.b16 %v1840
  %v1918 = vunpack.c.l.b16 %v1841
  %v1919 = vunpack.c.h.b16 %v1841
  %v1920 = vunpack.c.l.b16 %v1842
  %v1921 = vunpack.c.l.b16 %v1843
  %v1922 = vunpack.c.h.b16 %v1843
  %v1923 = vunpack.c.l.b16 %v1844
  %v1924 = vunpack.c.l.b16 %v1845
  %v1925 = vunpack.c.h.b16 %v1845
  %v1926 = vunpack.c.l.b16 %v1846
  %v1927 = vpack.c.b16 %v1882, %v1879
  %v1928 = vpack.c.b16 %v1883, %v1880
  %v1929 = vpack.c.b16 %v1884, %v1881
  %v1930 = vpack.c.b16 %v1888, %v1885
  %v1931 = vpack.c.b16 %v1889, %v1886
  %v1932 = vpack.c.b16 %v1890, %v1887
  %v1933 = vpack.c.b16 %v1894, %v1891
  %v1934 = vpack.c.b16 %v1895, %v1892
  %v1935 = vpack.c.b16 %v1896, %v1893
  %v1936 = vpack.c.b16 %v1900, %v1897
  %v1937 = vpack.c.b16 %v1901, %v1898
  %v1938 = vpack.c.b16 %v1902, %v1899
  %v1939 = vpack.c.b16 %v1906, %v1903
  %v1940 = vpack.c.b16 %v1907, %v1904
  %v1941 = vpack.c.b16 %v1908, %v1905
  %v1942 = vpack.c.b16 %v1912, %v1909
  %v1943 = vpack.c.b16 %v1913, %v1910
  %v1944 = vpack.c.b16 %v1914, %v1911
  %v1945 = vpack.c.b16 %v1918, %v1915
  %v1946 = vpack.c.b16 %v1919, %v1916
  %v1947 = vpack.c.b16 %v1920, %v1917
  %v1948 = vpack.c.b16 %v1924, %v1921
  %v1949 = vpack.c.b16 %v1925, %v1922
  %v1950 = vpack.c.b16 %v1926, %v1923
  %1975 = vmatpush.bf16.msra.mxu0 %v1948
  %1976 = vmatpush.bf16.msra.mxu0 %v1945
  %1977 = vmatpush.bf16.msra.mxu0 %v1942
  %1978 = vmatpush.bf16.msra.mxu0 %v1939
  %1979 = vmatpush.bf16.msra.mxu0 %v1936
  %1980 = vmatpush.bf16.msra.mxu0 %v1933
  %1981 = vmatpush.bf16.msra.mxu0 %v1930
  %1982 = vmatpush.bf16.msra.mxu0 %v1927
  %1983 = vmatmul.bf16.gmra.mxu0 %v1812
  %v1984 = vpop.f32.mrf.mxu0
  %v1985 = vadd.f32 0.0, %v1984
  %v1986 = vpop.f32.mrf.mxu0
  %1987 = vdwg.mxu0
  %1988 = vmatpush.bf16.msra.mxu0 %v1949
  %1989 = vmatpush.bf16.msra.mxu0 %v1946
  %1990 = vmatpush.bf16.msra.mxu0 %v1943
  %1991 = vmatpush.bf16.msra.mxu0 %v1940
  %1992 = vmatpush.bf16.msra.mxu0 %v1937
  %1993 = vmatpush.bf16.msra.mxu0 %v1934
  %1994 = vmatpush.bf16.msra.mxu0 %v1931
  %1995 = vmatpush.bf16.msra.mxu0 %v1928
  %1996 = vmatmul.bf16.gmra.mxu0 %v1812
  %v1997 = vpop.f32.mrf.mxu0
  %v1998 = vadd.f32 0.0, %v1997
  %v1999 = vpop.f32.mrf.mxu0
  %2000 = vdwg.mxu0
  %2001 = vmatpush.bf16.msra.mxu0 %v1950
  %2002 = vmatpush.bf16.msra.mxu0 %v1947
  %2003 = vmatpush.bf16.msra.mxu0 %v1944
  %2004 = vmatpush.bf16.msra.mxu0 %v1941
  %2005 = vmatpush.bf16.msra.mxu0 %v1938
  %2006 = vmatpush.bf16.msra.mxu0 %v1935
  %2007 = vmatpush.bf16.msra.mxu0 %v1932
  %2008 = vmatpush.bf16.msra.mxu0 %v1929
  %2009 = vmatmul.bf16.gmra.mxu0 %v1812
  %v2010 = vpop.f32.mrf.mxu0
  %v2011 = vadd.f32 0.0, %v2010
  %v2012 = vpop.f32.mrf.mxu0
  %2013 = vdwg.mxu0
  %s2014 = scalar_lea.vmem %s0, 84
  %v2015 = vld [vmem:[%s2014] sm:$0xf]
  %v2016 = vunpack.c.l.bf16 %v2015
  %v2017 = vadd.f32 %v2016, %v1985
  %v2018 = vxor.u32 %v2017, 2147483648
  %v2019 = vmul.f32 %v2018, 1.442695
  %v2020 = vpow.pop %v2019
  %v2021 = vadd.f32 %v2020, 1.0
  %v2022 = vrcp.pop %v2021
  %v2023 = vmul.f32 %v2021, %v2022
  %v2024 = vsub.f32 1.0, %v2023
  %v2025 = vmul.f32 %v2022, %v2024
  %v2026 = vadd.f32 %v2022, %v2025
  %vm2027 = vweird.f32 %v2021
  %vm2028 = vweird.f32 %v2022
  %vm2029 = vmor %vm2027, %vm2028
  %v2030 = vsel %vm2029, %v2022, %v2026
  %v2031 = vand.u32 2147483647, %v2021
  %vm2032 = vcmp.eq.f32.partialorder %v2031, 8.507059e+37
  %v2033 = vand.u32 %v2021, 2147483648
  %v2034 = vor.u32 1.1754944e-38, %v2033
  %v2035 = vsel %vm2032, %v2034, %v2030
  %v2036 = vmul.f32 1.0, %v2035
  %v2037 = vld [vmem:[%s2014 + $0x4] sm:$0xf]
  %v2038 = vunpack.c.l.bf16 %v2037
  %v2039 = vadd.f32 %v2038, %v1998
  %v2040 = vxor.u32 %v2039, 2147483648
  %v2041 = vmul.f32 %v2040, 1.442695
  %v2042 = vpow.pop %v2041
  %v2043 = vadd.f32 %v2042, 1.0
  %v2044 = vrcp.pop %v2043
  %v2045 = vmul.f32 %v2043, %v2044
  %v2046 = vsub.f32 1.0, %v2045
  %v2047 = vmul.f32 %v2044, %v2046
  %v2048 = vadd.f32 %v2044, %v2047
  %vm2049 = vweird.f32 %v2043
  %vm2050 = vweird.f32 %v2044
  %vm2051 = vmor %vm2049, %vm2050
  %v2052 = vsel %vm2051, %v2044, %v2048
  %v2053 = vand.u32 2147483647, %v2043
  %vm2054 = vcmp.eq.f32.partialorder %v2053, 8.507059e+37
  %v2055 = vand.u32 %v2043, 2147483648
  %v2056 = vor.u32 1.1754944e-38, %v2055
  %v2057 = vsel %vm2054, %v2056, %v2052
  %v2058 = vmul.f32 1.0, %v2057
  %v2059 = vld [vmem:[%s2014 + $0x8] sm:$0xf]
  %v2060 = vadd.f32 %v2011, %v21
  %v2061 = vmul.f32 %v2036, %v2060
  %v2062 = vunpack.c.l.bf16 %v2059
  %v2063 = vadd.f32 %v2062, %v2061
  %v2064 = vtanh.pop %v2063
  %v2065 = vsub.f32 %v1811, %v2064
  %v2066 = vmul.f32 %v2058, %v2065
  %v2067 = vadd.f32 %v2064, %v2066
  %v2068 = vpack.c.bf16 %v2067, %v2067
  %s2069 = scalar_lea.vmem %s3, 28
  %2070 = vst [vmem:[%s2069] sm:$0xf] %v2068
  %2071 = vst [vmem:[#allocation2] sm:$0xff] %v2067
  // Predicated region
  $region18: #{_gru_forward_impl.2} parent=0 // pred_check
    _
  $region19: #{_gru_forward_impl.2} parent=0 // pred_check_branch
    %2073 = sbr.rel (0) target = $region21
  $region20: #{_gru_forward_impl.2} parent=0 // pred_region
    _
  $region21: #{_gru_forward_impl.2} parent=0 // pred_fallthru
    _
  // Predicated region
  $region22: #{_gru_forward_impl.2} parent=0 // pred_check
    _
  $region23: #{_gru_forward_impl.2} parent=0 // pred_check_branch
    %2075 = sbr.rel (0) target = $region25
  $region24: #{_gru_forward_impl.2} parent=0 // pred_region
    _
  $region25: #{_gru_forward_impl.2} parent=0 // pred_fallthru
    _

</llo_original>
